<compile_context>
chip_gen: v6e
topology: v6e:2x2x1
jax: 0.10.0
libtpu: 0.0.40
codegen_flags: <defaults>
</compile_context>

<pallas_src>
import jax
import jax.numpy as jnp
from jax.experimental import pallas as pl
from jax.experimental.pallas import tpu as pltpu


# ---------------- packed-parameter slab layout (row indices) -------------------
VEC_BG, VEC_NW, VEC_NB = 0, 1, 2          # encoder g bias, self.norm weight/bias
VEC_B1, VEC_N1W, VEC_N1B = 3, 4, 5        # lin1 bias, unetnorm1 weight/bias
VEC_B2, VEC_N2W, VEC_N2B = 6, 7, 8        # lin2 bias, unetnorm2 weight/bias
VEC_BCA = 9                               # 'ca' bias
VEC_B3, VEC_N3W, VEC_N3B = 10, 11, 12     # lin3 bias, unetnorm3 weight/bias
VEC_B4 = 13                               # lin4 bias (padded to 128 lanes)
VEC_SA = 14                               # lanes 0,1 = SpatialAttention 7x7 center taps
NUM_VEC = 16                              # padded to a multiple of 8 sublanes

SQ_W2, SQ_WCA, SQ_W3 = 0, 1, 2            # rows of the [3, F, F] square-weight slab
GAM_1, GAM_2, GAM_CA, GAM_3 = 0, 1, 2, 3  # rows of the [4, B, F] gamma slab


# ------------------------------- Pallas kernel ---------------------------------
def make_kernel(B, S, batches_per_tile, CF):
    inv_s = 1.0 / float(S)

    def kernel(patches_ref, wc_ref, y_ref, wg_ref, w1_ref, wsq_ref,
               car_ref, cae_ref, w4_ref, vec_ref, gam_ref,
               out_ref, acc_ref):
        f32 = jnp.float32
        bf16 = jnp.bfloat16
        i = pl.program_id(0)

        def mm(a, b):
            # bf16 operands (weights already bf16), f32 accumulation on the MXU
            return jnp.dot(a.astype(bf16), b, preferred_element_type=f32)

        # ---- stem tile: conv7x7 (im2col matmul) + ReLU + per-sample global-avg-pool ----
        conv = jnp.maximum(mm(patches_ref[...], wc_ref[...]), 0.0)       # [tm, CF] f32
        # ReLU precedes the pool; one fused cross-sublane reduce per tile.
        psum = jnp.sum(conv.reshape(batches_per_tile, S, CF), axis=1)    # [bpt, CF]
        # Each tile owns whole samples -> its pooled rows are disjoint from every other
        # tile's: store directly into this tile's slice of the GAP staging scratch.
        acc_ref[i] = psum

        # ------------------------- head: last grid step only --------------------------
        @pl.when(i == pl.num_programs(0) - 1)
        def _():
            def vrow(r):
                return vec_ref[r:r + 1, :]                               # [1, F]

            def bn(h, w, b, eps=1e-5):
                # BatchNorm1d, training mode: batch mean / biased batch variance.
                mu = jnp.mean(h, axis=0, keepdims=True)
                var = jnp.mean((h - mu) ** 2, axis=0, keepdims=True)
                return (h - mu) * jax.lax.rsqrt(var + eps) * w + b

            def softplus(v):
                return jnp.maximum(v, 0.0) + jnp.log1p(jnp.exp(-jnp.abs(v)))

            def sigmoid(v):
                return pl.reciprocal(1.0 + jnp.exp(-v), approx=True)

            # encoder_x: finalize GAP + Linear g + self.norm
            xg = acc_ref[...].reshape(B, CF) * inv_s                     # [B, CF] f32
            xf = mm(xg, wg_ref[...]) + vrow(VEC_BG)                      # [B, F]
            xf = bn(xf, vrow(VEC_NW), vrow(VEC_NB))

            # lin1 (ConditionalLinear) + unetnorm1 + softplus, gated by encoder feature
            h = gam_ref[GAM_1] * (mm(y_ref[...], w1_ref[...]) + vrow(VEC_B1))
            h = bn(h, vrow(VEC_N1W), vrow(VEC_N1B))
            h = softplus(h)
            h = xf * h

            # lin2 (ConditionalLinear) + unetnorm2
            h = gam_ref[GAM_2] * (mm(h, wsq_ref[SQ_W2]) + vrow(VEC_B2))
            h = bn(h, vrow(VEC_N2W), vrow(VEC_N2B))

            # CBAM ChannelAttention: 1x1 spatial -> avg_pool == max_pool == h
            z = mm(jnp.maximum(mm(h, car_ref[...]), 0.0), cae_ref[...])
            h = sigmoid(z + z) * h
            # CBAM SpatialAttention: only the 7x7 kernel's center taps touch a 1x1 input
            avg = jnp.mean(h, axis=1, keepdims=True)
            mx = jnp.max(h, axis=1, keepdims=True)
            sa_a = vec_ref[VEC_SA:VEC_SA + 1, 0:1]
            sa_b = vec_ref[VEC_SA:VEC_SA + 1, 1:2]
            h = sigmoid(avg * sa_a + mx * sa_b) * h

            # 'ca' (ConditionalLinear, see TODO) + softplus
            h = gam_ref[GAM_CA] * (mm(h, wsq_ref[SQ_WCA]) + vrow(VEC_BCA))
            h = softplus(h)

            # lin3 (ConditionalLinear) + unetnorm3 + softplus
            h = gam_ref[GAM_3] * (mm(h, wsq_ref[SQ_W3]) + vrow(VEC_B3))
            h = bn(h, vrow(VEC_N3W), vrow(VEC_N3B))
            h = softplus(h)

            # lin4 (output padded to 128 lanes; wrapper slices [:, :y_dim])
            out_ref[...] = mm(h, w4_ref[...]) + vrow(VEC_B4)

    return kernel


# ----------------------------------- glue --------------------------------------
def im2col_nchw(x, kh, kw, stride, pad, k_pad):
    """NCHW image -> [B*Ho*Wo, k_pad] zero-padded patch matrix (PyTorch flatten order)."""
    B, C, H, W = x.shape
    Ho = (H + 2 * pad - kh) // stride + 1
    Wo = (W + 2 * pad - kw) // stride + 1
    xp = jnp.pad(x, ((0, 0), (0, 0), (pad, pad), (pad, pad)))
    cols = []
    for i in range(kh):
        for j in range(kw):
            cols.append(xp[:, :, i:i + stride * Ho:stride, j:j + stride * Wo:stride])
    p = jnp.stack(cols, axis=0)              # [kh*kw, B, C, Ho, Wo]
    p = p.transpose(1, 3, 4, 2, 0)           # [B, Ho, Wo, C, kh*kw]
    p = p.reshape(B * Ho * Wo, C * kh * kw)
    k = C * kh * kw
    if k_pad > k:
        p = jnp.pad(p, ((0, 0), (0, k_pad - k)))
    return p, Ho, Wo


def init_params(key, *, in_ch=3, CF=128, F=128, YD=16, n_steps=11, K_PAD=256, OUT_PAD=128):
    assert F == 128 and OUT_PAD == 128, "slab packing assumes feature_dim == 128"
    ks = jax.random.split(key, 24)
    bf16 = jnp.bfloat16

    def w(k, shape, scale=0.05):
        return (scale * jax.random.normal(k, shape)).astype(jnp.float32)

    def uni(k, shape):  # nn.Embedding(...).weight.data.uniform_()
        return jax.random.uniform(k, shape, dtype=jnp.float32)

    K = in_ch * 49
    p = {}
    # matmul weights are stored bf16 (MXU-native); accumulation is always f32 in-kernel.
    wc = jnp.zeros((K_PAD, CF), jnp.float32).at[:K].set(w(ks[0], (K, CF)))
    p["wc"] = wc.astype(bf16)
    p["wg"] = w(ks[1], (CF, F)).astype(bf16)
    p["w1"] = w(ks[3], (YD, F)).astype(bf16)
    # three [F, F] weights packed into one slab: lin2, 'ca', lin3
    p["wsq"] = jnp.stack([w(ks[6], (F, F)), w(ks[12], (F, F)), w(ks[15], (F, F))],
                         axis=0).astype(bf16)
    # ChannelAttention fc weights (transposed), bottleneck F//16 zero-padded to 128 lanes
    red = F // 16
    p["car"] = jnp.zeros((F, 128), jnp.float32).at[:, :red].set(w(ks[9], (F, red))).astype(bf16)
    p["cae"] = jnp.zeros((128, F), jnp.float32).at[:red, :].set(w(ks[10], (red, F))).astype(bf16)
    # lin4 weight (transposed), output zero-padded to OUT_PAD lanes
    p["w4"] = jnp.zeros((F, OUT_PAD), jnp.float32).at[:, :YD].set(w(ks[18], (F, YD))).astype(bf16)
    # embedding tables for the four ConditionalLinears (kept f32; elementwise gammas)
    p["emb1"] = uni(ks[5], (n_steps, F))
    p["emb2"] = uni(ks[8], (n_steps, F))
    p["embca"] = uni(ks[14], (n_steps, F))
    p["emb3"] = uni(ks[17], (n_steps, F))
    # packed [NUM_VEC, F] slab of every [1, F] vector parameter (biases, BN affine, SA taps)
    vec = jnp.zeros((NUM_VEC, F), jnp.float32)
    vec = vec.at[VEC_BG].set(w(ks[2], (F,)))
    vec = vec.at[VEC_NW].set(jnp.ones((F,), jnp.float32))
    vec = vec.at[VEC_B1].set(w(ks[4], (F,)))
    vec = vec.at[VEC_N1W].set(jnp.ones((F,), jnp.float32))
    vec = vec.at[VEC_B2].set(w(ks[7], (F,)))
    vec = vec.at[VEC_N2W].set(jnp.ones((F,), jnp.float32))
    vec = vec.at[VEC_BCA].set(w(ks[13], (F,)))
    vec = vec.at[VEC_B3].set(w(ks[16], (F,)))
    vec = vec.at[VEC_N3W].set(jnp.ones((F,), jnp.float32))
    vec = vec.at[VEC_B4, :YD].set(w(ks[19], (YD,)))
    sa_full = w(ks[11], (1, 2, 7, 7))                    # SpatialAttention 7x7 conv weight
    vec = vec.at[VEC_SA, 0:2].set(sa_full[0, :, 3, 3])   # only center taps touch a 1x1 input
    p["vec"] = vec
    return p


def conditional_model_forward(p, x_img, y, t, *, YD=16, CF=128, F=128,
                              K_PAD=256, OUT_PAD=128, rows_per_tile_target=512):
    B = x_img.shape[0]
    # single bf16 materialization of the padded patch slab (pad + cast fused into producer)
    patches, Ho, Wo = im2col_nchw(x_img.astype(jnp.bfloat16), 7, 7, 2, 3, K_PAD)
    S = Ho * Wo

    # row tiling: whole samples per tile so each tile's pooled rows are disjoint.
    # Small slabs (e.g. the shipped toy config: 512x256 bf16 = 256 KiB) collapse to a
    # SINGLE grid step; larger images target >= rows_per_tile_target rows per tile.
    if B * S * K_PAD * 2 <= 4 * 1024 * 1024:
        batches_per_tile = B
    else:
        batches_per_tile = max(1, min(B, rows_per_tile_target // S))
        while B % batches_per_tile:
            batches_per_tile -= 1
    tm = batches_per_tile * S
    num_tiles = B // batches_per_tile

    # per-step gammas for the four ConditionalLinears, packed into one slab
    gam = jnp.stack([p["emb1"][t], p["emb2"][t], p["embca"][t], p["emb3"][t]], axis=0)

    const2 = lambda shape: pl.BlockSpec(shape, lambda i: (0, 0))
    const3 = lambda shape: pl.BlockSpec(shape, lambda i: (0, 0, 0))

    # VMEM budget: 2x patches tile (double-buffered) + weight slabs + staging/out.
    # Keep well under v7x's 64 MiB physical VMEM (v5e/v6e have 128 MiB).
    patches_tile_bytes = tm * K_PAD * 2
    vmem_limit = int(min(96 * 2**20, max(32 * 2**20, 4 * patches_tile_bytes + 8 * 2**20)))

    kernel = make_kernel(B, S, batches_per_tile, CF)
    grid_spec = pltpu.PrefetchScalarGridSpec(
        num_scalar_prefetch=0,
        grid=(num_tiles,),
        in_specs=[
            pl.BlockSpec((tm, K_PAD), lambda i: (i, 0)),   # patches: pipelined over rows
            const2((K_PAD, CF)),                           # wc   (bf16 stem weight)
            const2((B, y.shape[1])),                       # y
            const2((CF, F)),                               # wg   (bf16)
            const2((y.shape[1], F)),                       # w1   (bf16)
            const3((3, F, F)),                             # wsq  (lin2 / 'ca' / lin3, bf16)
            const2((F, 128)),                              # car  (padded bottleneck, bf16)
            const2((128, F)),                              # cae  (padded bottleneck, bf16)
            const2((F, OUT_PAD)),                          # w4   (padded output, bf16)
            const2((NUM_VEC, F)),                          # vec slab (f32)
            const3((4, B, F)),                             # gamma slab (f32)
        ],
        out_specs=pl.BlockSpec((B, OUT_PAD), lambda i: (0, 0)),
        # per-tile GAP staging buffer; tiles write disjoint slices, head reads all of it
        scratch_shapes=[pltpu.VMEM((num_tiles, batches_per_tile, CF), jnp.float32)],
    )
    out = pl.pallas_call(
        kernel,
        out_shape=jax.ShapeDtypeStruct((B, OUT_PAD), jnp.float32),
        grid_spec=grid_spec,
        compiler_params=pltpu.CompilerParams(
            dimension_semantics=("arbitrary",),            # row axis carries GAP + head
            vmem_limit_bytes=vmem_limit,
        ),
    )(patches, p["wc"], y, p["wg"], p["w1"], p["wsq"],
      p["car"], p["cae"], p["w4"], p["vec"], gam)
    return out[:, :YD]                                     # drop lane padding


if __name__ == "__main__":
    # small, self-consistent config
    B = 8            # batch
    H = W = 16       # image spatial
    CIN = 3          # image channels
    CF = 128         # backbone feature channels (stand-in for resnet18's 512)
    F = 128          # feature_dim
    YD = 16          # num_classes (y_dim)
    N_STEPS = 11     # timesteps + 1

    key = jax.random.PRNGKey(0)
    kp, kx, ky, kt = jax.random.split(key, 4)

    params = init_params(kp, in_ch=CIN, CF=CF, F=F, YD=YD, n_steps=N_STEPS)
    x_img = jax.random.normal(kx, (B, CIN, H, W), dtype=jnp.float32)   # NCHW
    y_in = jax.random.normal(ky, (B, YD), dtype=jnp.float32)
    t_in = jax.random.randint(kt, (B,), 0, N_STEPS)

    fwd = jax.jit(lambda p, x, y, t: conditional_model_forward(p, x, y, t, YD=YD, CF=CF, F=F))
    out = fwd(params, x_img, y_in, t_in)
    jax.block_until_ready(out)
    assert out.shape == (B, YD) and out.dtype == jnp.float32
    print("KERNEL_OK")
</pallas_src>

<mosaic_0001>
module attributes {stable_mosaic.version = 11 : i64} {
  func.func @kernel(%arg0: i32, %arg1: memref<512x256xbf16, #tpu.memory_space<vmem>>, %arg2: memref<256x128xbf16, #tpu.memory_space<vmem>>, %arg3: memref<8x16xf32, #tpu.memory_space<vmem>>, %arg4: memref<128x128xbf16, #tpu.memory_space<vmem>>, %arg5: memref<16x128xbf16, #tpu.memory_space<vmem>>, %arg6: memref<3x128x128xbf16, #tpu.memory_space<vmem>>, %arg7: memref<128x128xbf16, #tpu.memory_space<vmem>>, %arg8: memref<128x128xbf16, #tpu.memory_space<vmem>>, %arg9: memref<128x128xbf16, #tpu.memory_space<vmem>>, %arg10: memref<16x128xf32, #tpu.memory_space<vmem>>, %arg11: memref<4x8x128xf32, #tpu.memory_space<vmem>>, %arg12: memref<8x128xf32, #tpu.memory_space<vmem>>, %arg13: memref<1x8x128xf32, #tpu.memory_space<vmem>>) attributes {dimension_semantics = [#tpu.dimension_semantics<arbitrary>], iteration_bounds = array<i64: 1>, scalar_prefetch = 0 : i64, scratch_operands = 1 : i64, tpu.core_type = #tpu.core_type<tc>, window_params = [{transform_indices = @transform_0, window_bounds = array<i64: 512, 256>}, {pipeline_mode = #tpu.pipeline_mode<synchronous>, transform_indices = @transform_1, window_bounds = array<i64: 256, 128>}, {pipeline_mode = #tpu.pipeline_mode<synchronous>, transform_indices = @transform_2, window_bounds = array<i64: 8, 16>}, {pipeline_mode = #tpu.pipeline_mode<synchronous>, transform_indices = @transform_3, window_bounds = array<i64: 128, 128>}, {pipeline_mode = #tpu.pipeline_mode<synchronous>, transform_indices = @transform_4, window_bounds = array<i64: 16, 128>}, {pipeline_mode = #tpu.pipeline_mode<synchronous>, transform_indices = @transform_5, window_bounds = array<i64: 3, 128, 128>}, {pipeline_mode = #tpu.pipeline_mode<synchronous>, transform_indices = @transform_6, window_bounds = array<i64: 128, 128>}, {pipeline_mode = #tpu.pipeline_mode<synchronous>, transform_indices = @transform_7, window_bounds = array<i64: 128, 128>}, {pipeline_mode = #tpu.pipeline_mode<synchronous>, transform_indices = @transform_8, window_bounds = array<i64: 128, 128>}, {pipeline_mode = #tpu.pipeline_mode<synchronous>, transform_indices = @transform_9, window_bounds = array<i64: 16, 128>}, {pipeline_mode = #tpu.pipeline_mode<synchronous>, transform_indices = @transform_10, window_bounds = array<i64: 4, 8, 128>}, {pipeline_mode = #tpu.pipeline_mode<synchronous>, transform_indices = @transform_11, window_bounds = array<i64: 8, 128>}]} {
    %c0 = arith.constant 0 : index
    %c0_0 = arith.constant 0 : index
    %0 = vector.load %arg1[%c0, %c0_0] : memref<512x256xbf16, #tpu.memory_space<vmem>>, vector<512x256xbf16>
    %c0_1 = arith.constant 0 : index
    %c0_2 = arith.constant 0 : index
    %1 = vector.load %arg2[%c0_1, %c0_2] : memref<256x128xbf16, #tpu.memory_space<vmem>>, vector<256x128xbf16>
    %cst = arith.constant dense<0.000000e+00> : vector<512x128xf32>
    %2 = tpu.matmul %0, %1, %cst {dimension_numbers = #tpu.dot_dimension_numbers<[1], [0], [0], [1], [0, 0, 1, 1], [], []>} : vector<512x256xbf16>, vector<256x128xbf16>, vector<512x128xf32> -> vector<512x128xf32>
    %cst_3 = arith.constant 0.000000e+00 : f32
    %3 = vector.broadcast %cst_3 : f32 to vector<512x128xf32>
    %4 = arith.maximumf %2, %3 : vector<512x128xf32>
    %5 = vector.shape_cast %4 : vector<512x128xf32> to vector<8x64x128xf32>
    %cst_4 = arith.constant dense<0.000000e+00> : vector<8x128xf32>
    %6 = vector.multi_reduction <add>, %5, %cst_4 [1] : vector<8x64x128xf32> to vector<8x128xf32>
    %7 = arith.index_cast %arg0 : i32 to index
    %c0_5 = arith.constant 0 : index
    %c0_6 = arith.constant 0 : index
    %8 = vector.load %arg13[%7, %c0_5, %c0_6] : memref<1x8x128xf32, #tpu.memory_space<vmem>>, vector<1x8x128xf32>
    %9 = vector.shape_cast %8 : vector<1x8x128xf32> to vector<8x128xf32>
    %10 = vector.shape_cast %6 : vector<8x128xf32> to vector<1x8x128xf32>
    tpu.vector_store %arg13[%7, %c0_5, %c0_6], %10 {strides = array<i32>} : memref<1x8x128xf32, #tpu.memory_space<vmem>>, vector<1x8x128xf32>,
    %c0_i32 = arith.constant 0 : i32
    %11 = arith.cmpi eq, %arg0, %c0_i32 : i32
    %12 = arith.extui %11 : i1 to i32
    %c0_i32_7 = arith.constant 0 : i32
    %13 = arith.cmpi ne, %12, %c0_i32_7 : i32
    scf.if %13 {
      %c0_8 = arith.constant 0 : index
      %c0_9 = arith.constant 0 : index
      %c0_10 = arith.constant 0 : index
      %14 = vector.load %arg13[%c0_8, %c0_9, %c0_10] : memref<1x8x128xf32, #tpu.memory_space<vmem>>, vector<1x8x128xf32>
      %15 = vector.shape_cast %14 : vector<1x8x128xf32> to vector<8x128xf32>
      %cst_11 = arith.constant 1.562500e-02 : f32
      %16 = vector.broadcast %cst_11 : f32 to vector<8x128xf32>
      %17 = arith.mulf %15, %16 : vector<8x128xf32>
      %c0_12 = arith.constant 0 : index
      %c0_13 = arith.constant 0 : index
      %18 = vector.load %arg4[%c0_12, %c0_13] : memref<128x128xbf16, #tpu.memory_space<vmem>>, vector<128x128xbf16>
      %19 = arith.truncf %17 : vector<8x128xf32> to vector<8x128xbf16>
      %cst_14 = arith.constant dense<0.000000e+00> : vector<8x128xf32>
      %20 = tpu.matmul %19, %18, %cst_14 {dimension_numbers = #tpu.dot_dimension_numbers<[1], [0], [0], [1], [0, 0, 1, 1], [], []>} : vector<8x128xbf16>, vector<128x128xbf16>, vector<8x128xf32> -> vector<8x128xf32>
      %c0_15 = arith.constant 0 : index
      %c0_16 = arith.constant 0 : index
      %21 = vector.load %arg10[%c0_15, %c0_16] : memref<16x128xf32, #tpu.memory_space<vmem>>, vector<1x128xf32>
      %22 = vector.broadcast %21 : vector<1x128xf32> to vector<8x128xf32>
      %23 = arith.addf %20, %22 : vector<8x128xf32>
      %c1 = arith.constant 1 : index
      %c0_17 = arith.constant 0 : index
      %24 = vector.load %arg10[%c1, %c0_17] : memref<16x128xf32, #tpu.memory_space<vmem>>, vector<1x128xf32>
      %c2 = arith.constant 2 : index
      %c0_18 = arith.constant 0 : index
      %25 = vector.load %arg10[%c2, %c0_18] : memref<16x128xf32, #tpu.memory_space<vmem>>, vector<1x128xf32>
      %cst_19 = arith.constant dense<0.000000e+00> : vector<128xf32>
      %26 = vector.multi_reduction <add>, %23, %cst_19 [0] : vector<8x128xf32> to vector<128xf32>
      %27 = vector.shape_cast %26 : vector<128xf32> to vector<1x128xf32>
      %cst_20 = arith.constant 8.000000e+00 : f32
      %28 = vector.broadcast %cst_20 : f32 to vector<1x128xf32>
      %29 = arith.divf %27, %28 : vector<1x128xf32>
      %30 = vector.broadcast %29 : vector<1x128xf32> to vector<8x128xf32>
      %31 = arith.subf %23, %30 : vector<8x128xf32>
      %32 = arith.mulf %31, %31 : vector<8x128xf32>
      %cst_21 = arith.constant dense<0.000000e+00> : vector<128xf32>
      %33 = vector.multi_reduction <add>, %32, %cst_21 [0] : vector<8x128xf32> to vector<128xf32>
      %34 = vector.shape_cast %33 : vector<128xf32> to vector<1x128xf32>
      %cst_22 = arith.constant 8.000000e+00 : f32
      %35 = vector.broadcast %cst_22 : f32 to vector<1x128xf32>
      %36 = arith.divf %34, %35 : vector<1x128xf32>
      %37 = vector.broadcast %29 : vector<1x128xf32> to vector<8x128xf32>
      %38 = arith.subf %23, %37 : vector<8x128xf32>
      %cst_23 = arith.constant 9.99999974E-6 : f32
      %39 = vector.broadcast %cst_23 : f32 to vector<1x128xf32>
      %40 = arith.addf %36, %39 : vector<1x128xf32>
      %41 = math.rsqrt %40 : vector<1x128xf32>
      %42 = vector.broadcast %41 : vector<1x128xf32> to vector<8x128xf32>
      %43 = arith.mulf %38, %42 : vector<8x128xf32>
      %44 = vector.broadcast %24 : vector<1x128xf32> to vector<8x128xf32>
      %45 = arith.mulf %43, %44 : vector<8x128xf32>
      %46 = vector.broadcast %25 : vector<1x128xf32> to vector<8x128xf32>
      %47 = arith.addf %45, %46 : vector<8x128xf32>
      %c0_24 = arith.constant 0 : index
      %c0_25 = arith.constant 0 : index
      %c0_26 = arith.constant 0 : index
      %48 = vector.load %arg11[%c0_24, %c0_25, %c0_26] : memref<4x8x128xf32, #tpu.memory_space<vmem>>, vector<1x8x128xf32>
      %49 = vector.shape_cast %48 : vector<1x8x128xf32> to vector<8x128xf32>
      %c0_27 = arith.constant 0 : index
      %c0_28 = arith.constant 0 : index
      %50 = vector.load %arg3[%c0_27, %c0_28] : memref<8x16xf32, #tpu.memory_space<vmem>>, vector<8x16xf32>
      %c0_29 = arith.constant 0 : index
      %c0_30 = arith.constant 0 : index
      %51 = vector.load %arg5[%c0_29, %c0_30] : memref<16x128xbf16, #tpu.memory_space<vmem>>, vector<16x128xbf16>
      %52 = arith.truncf %50 : vector<8x16xf32> to vector<8x16xbf16>
      %cst_31 = arith.constant dense<0.000000e+00> : vector<8x128xf32>
      %53 = tpu.matmul %52, %51, %cst_31 {dimension_numbers = #tpu.dot_dimension_numbers<[1], [0], [0], [1], [0, 0, 1, 1], [], []>} : vector<8x16xbf16>, vector<16x128xbf16>, vector<8x128xf32> -> vector<8x128xf32>
      %c3 = arith.constant 3 : index
      %c0_32 = arith.constant 0 : index
      %54 = vector.load %arg10[%c3, %c0_32] : memref<16x128xf32, #tpu.memory_space<vmem>>, vector<1x128xf32>
      %55 = vector.broadcast %54 : vector<1x128xf32> to vector<8x128xf32>
      %56 = arith.addf %53, %55 : vector<8x128xf32>
      %57 = arith.mulf %49, %56 : vector<8x128xf32>
      %c4 = arith.constant 4 : index
      %c0_33 = arith.constant 0 : index
      %58 = vector.load %arg10[%c4, %c0_33] : memref<16x128xf32, #tpu.memory_space<vmem>>, vector<1x128xf32>
      %c5 = arith.constant 5 : index
      %c0_34 = arith.constant 0 : index
      %59 = vector.load %arg10[%c5, %c0_34] : memref<16x128xf32, #tpu.memory_space<vmem>>, vector<1x128xf32>
      %cst_35 = arith.constant dense<0.000000e+00> : vector<128xf32>
      %60 = vector.multi_reduction <add>, %57, %cst_35 [0] : vector<8x128xf32> to vector<128xf32>
      %61 = vector.shape_cast %60 : vector<128xf32> to vector<1x128xf32>
      %cst_36 = arith.constant 8.000000e+00 : f32
      %62 = vector.broadcast %cst_36 : f32 to vector<1x128xf32>
      %63 = arith.divf %61, %62 : vector<1x128xf32>
      %64 = vector.broadcast %63 : vector<1x128xf32> to vector<8x128xf32>
      %65 = arith.subf %57, %64 : vector<8x128xf32>
      %66 = arith.mulf %65, %65 : vector<8x128xf32>
      %cst_37 = arith.constant dense<0.000000e+00> : vector<128xf32>
      %67 = vector.multi_reduction <add>, %66, %cst_37 [0] : vector<8x128xf32> to vector<128xf32>
      %68 = vector.shape_cast %67 : vector<128xf32> to vector<1x128xf32>
      %cst_38 = arith.constant 8.000000e+00 : f32
      %69 = vector.broadcast %cst_38 : f32 to vector<1x128xf32>
      %70 = arith.divf %68, %69 : vector<1x128xf32>
      %71 = vector.broadcast %63 : vector<1x128xf32> to vector<8x128xf32>
      %72 = arith.subf %57, %71 : vector<8x128xf32>
      %cst_39 = arith.constant 9.99999974E-6 : f32
      %73 = vector.broadcast %cst_39 : f32 to vector<1x128xf32>
      %74 = arith.addf %70, %73 : vector<1x128xf32>
      %75 = math.rsqrt %74 : vector<1x128xf32>
      %76 = vector.broadcast %75 : vector<1x128xf32> to vector<8x128xf32>
      %77 = arith.mulf %72, %76 : vector<8x128xf32>
      %78 = vector.broadcast %58 : vector<1x128xf32> to vector<8x128xf32>
      %79 = arith.mulf %77, %78 : vector<8x128xf32>
      %80 = vector.broadcast %59 : vector<1x128xf32> to vector<8x128xf32>
      %81 = arith.addf %79, %80 : vector<8x128xf32>
      %cst_40 = arith.constant 0.000000e+00 : f32
      %82 = vector.broadcast %cst_40 : f32 to vector<8x128xf32>
      %83 = arith.maximumf %81, %82 : vector<8x128xf32>
      %84 = math.absf %81 : vector<8x128xf32>
      %cst_41 = arith.constant 0.000000e+00 : f32
      %85 = vector.broadcast %cst_41 : f32 to vector<8x128xf32>
      %86 = arith.subf %85, %84 : vector<8x128xf32>
      %87 = math.exp %86 : vector<8x128xf32>
      %88 = math.log1p %87 : vector<8x128xf32>
      %89 = arith.addf %83, %88 : vector<8x128xf32>
      %90 = arith.mulf %47, %89 : vector<8x128xf32>
      %c1_42 = arith.constant 1 : index
      %c0_43 = arith.constant 0 : index
      %c0_44 = arith.constant 0 : index
      %91 = vector.load %arg11[%c1_42, %c0_43, %c0_44] : memref<4x8x128xf32, #tpu.memory_space<vmem>>, vector<1x8x128xf32>
      %92 = vector.shape_cast %91 : vector<1x8x128xf32> to vector<8x128xf32>
      %c0_45 = arith.constant 0 : index
      %c0_46 = arith.constant 0 : index
      %c0_47 = arith.constant 0 : index
      %93 = vector.load %arg6[%c0_45, %c0_46, %c0_47] : memref<3x128x128xbf16, #tpu.memory_space<vmem>>, vector<1x128x128xbf16>
      %94 = vector.shape_cast %93 : vector<1x128x128xbf16> to vector<128x128xbf16>
      %95 = arith.truncf %90 : vector<8x128xf32> to vector<8x128xbf16>
      %cst_48 = arith.constant dense<0.000000e+00> : vector<8x128xf32>
      %96 = tpu.matmul %95, %94, %cst_48 {dimension_numbers = #tpu.dot_dimension_numbers<[1], [0], [0], [1], [0, 0, 1, 1], [], []>} : vector<8x128xbf16>, vector<128x128xbf16>, vector<8x128xf32> -> vector<8x128xf32>
      %c6 = arith.constant 6 : index
      %c0_49 = arith.constant 0 : index
      %97 = vector.load %arg10[%c6, %c0_49] : memref<16x128xf32, #tpu.memory_space<vmem>>, vector<1x128xf32>
      %98 = vector.broadcast %97 : vector<1x128xf32> to vector<8x128xf32>
      %99 = arith.addf %96, %98 : vector<8x128xf32>
      %100 = arith.mulf %92, %99 : vector<8x128xf32>
      %c7 = arith.constant 7 : index
      %c0_50 = arith.constant 0 : index
      %101 = vector.load %arg10[%c7, %c0_50] : memref<16x128xf32, #tpu.memory_space<vmem>>, vector<1x128xf32>
      %c8 = arith.constant 8 : index
      %c0_51 = arith.constant 0 : index
      %102 = vector.load %arg10[%c8, %c0_51] : memref<16x128xf32, #tpu.memory_space<vmem>>, vector<1x128xf32>
      %cst_52 = arith.constant dense<0.000000e+00> : vector<128xf32>
      %103 = vector.multi_reduction <add>, %100, %cst_52 [0] : vector<8x128xf32> to vector<128xf32>
      %104 = vector.shape_cast %103 : vector<128xf32> to vector<1x128xf32>
      %cst_53 = arith.constant 8.000000e+00 : f32
      %105 = vector.broadcast %cst_53 : f32 to vector<1x128xf32>
      %106 = arith.divf %104, %105 : vector<1x128xf32>
      %107 = vector.broadcast %106 : vector<1x128xf32> to vector<8x128xf32>
      %108 = arith.subf %100, %107 : vector<8x128xf32>
      %109 = arith.mulf %108, %108 : vector<8x128xf32>
      %cst_54 = arith.constant dense<0.000000e+00> : vector<128xf32>
      %110 = vector.multi_reduction <add>, %109, %cst_54 [0] : vector<8x128xf32> to vector<128xf32>
      %111 = vector.shape_cast %110 : vector<128xf32> to vector<1x128xf32>
      %cst_55 = arith.constant 8.000000e+00 : f32
      %112 = vector.broadcast %cst_55 : f32 to vector<1x128xf32>
      %113 = arith.divf %111, %112 : vector<1x128xf32>
      %114 = vector.broadcast %106 : vector<1x128xf32> to vector<8x128xf32>
      %115 = arith.subf %100, %114 : vector<8x128xf32>
      %cst_56 = arith.constant 9.99999974E-6 : f32
      %116 = vector.broadcast %cst_56 : f32 to vector<1x128xf32>
      %117 = arith.addf %113, %116 : vector<1x128xf32>
      %118 = math.rsqrt %117 : vector<1x128xf32>
      %119 = vector.broadcast %118 : vector<1x128xf32> to vector<8x128xf32>
      %120 = arith.mulf %115, %119 : vector<8x128xf32>
      %121 = vector.broadcast %101 : vector<1x128xf32> to vector<8x128xf32>
      %122 = arith.mulf %120, %121 : vector<8x128xf32>
      %123 = vector.broadcast %102 : vector<1x128xf32> to vector<8x128xf32>
      %124 = arith.addf %122, %123 : vector<8x128xf32>
      %c0_57 = arith.constant 0 : index
      %c0_58 = arith.constant 0 : index
      %125 = vector.load %arg7[%c0_57, %c0_58] : memref<128x128xbf16, #tpu.memory_space<vmem>>, vector<128x128xbf16>
      %126 = arith.truncf %124 : vector<8x128xf32> to vector<8x128xbf16>
      %cst_59 = arith.constant dense<0.000000e+00> : vector<8x128xf32>
      %127 = tpu.matmul %126, %125, %cst_59 {dimension_numbers = #tpu.dot_dimension_numbers<[1], [0], [0], [1], [0, 0, 1, 1], [], []>} : vector<8x128xbf16>, vector<128x128xbf16>, vector<8x128xf32> -> vector<8x128xf32>
      %cst_60 = arith.constant 0.000000e+00 : f32
      %128 = vector.broadcast %cst_60 : f32 to vector<8x128xf32>
      %129 = arith.maximumf %127, %128 : vector<8x128xf32>
      %c0_61 = arith.constant 0 : index
      %c0_62 = arith.constant 0 : index
      %130 = vector.load %arg8[%c0_61, %c0_62] : memref<128x128xbf16, #tpu.memory_space<vmem>>, vector<128x128xbf16>
      %131 = arith.truncf %129 : vector<8x128xf32> to vector<8x128xbf16>
      %cst_63 = arith.constant dense<0.000000e+00> : vector<8x128xf32>
      %132 = tpu.matmul %131, %130, %cst_63 {dimension_numbers = #tpu.dot_dimension_numbers<[1], [0], [0], [1], [0, 0, 1, 1], [], []>} : vector<8x128xbf16>, vector<128x128xbf16>, vector<8x128xf32> -> vector<8x128xf32>
      %133 = arith.addf %132, %132 : vector<8x128xf32>
      %cst_64 = arith.constant 0.000000e+00 : f32
      %134 = vector.broadcast %cst_64 : f32 to vector<8x128xf32>
      %135 = arith.subf %134, %133 : vector<8x128xf32>
      %136 = math.exp %135 : vector<8x128xf32>
      %cst_65 = arith.constant 1.000000e+00 : f32
      %137 = vector.broadcast %cst_65 : f32 to vector<8x128xf32>
      %138 = arith.addf %137, %136 : vector<8x128xf32>
      %139 = tpu.reciprocal %138 {approx = true} : vector<8x128xf32> -> vector<8x128xf32>
      %140 = arith.mulf %139, %124 : vector<8x128xf32>
      %cst_66 = arith.constant dense<0.000000e+00> : vector<8xf32>
      %141 = vector.multi_reduction <add>, %140, %cst_66 [1] : vector<8x128xf32> to vector<8xf32>
      %142 = vector.shape_cast %141 : vector<8xf32> to vector<8x1xf32>
      %cst_67 = arith.constant 1.280000e+02 : f32
      %143 = vector.broadcast %cst_67 : f32 to vector<8x1xf32>
      %144 = arith.divf %142, %143 : vector<8x1xf32>
      %cst_68 = arith.constant dense<0xFF800000> : vector<8xf32>
      %145 = vector.multi_reduction <maximumf>, %140, %cst_68 [1] : vector<8x128xf32> to vector<8xf32>
      %146 = vector.shape_cast %145 : vector<8xf32> to vector<8x1xf32>
      %c14 = arith.constant 14 : index
      %c0_69 = arith.constant 0 : index
      %147 = vector.load %arg10[%c14, %c0_69] : memref<16x128xf32, #tpu.memory_space<vmem>>, vector<1x1xf32>
      %c14_70 = arith.constant 14 : index
      %c1_71 = arith.constant 1 : index
      %148 = vector.load %arg10[%c14_70, %c1_71] : memref<16x128xf32, #tpu.memory_space<vmem>>, vector<1x1xf32>
      %149 = vector.broadcast %147 : vector<1x1xf32> to vector<8x1xf32>
      %150 = arith.mulf %144, %149 : vector<8x1xf32>
      %151 = vector.broadcast %148 : vector<1x1xf32> to vector<8x1xf32>
      %152 = arith.mulf %146, %151 : vector<8x1xf32>
      %153 = arith.addf %150, %152 : vector<8x1xf32>
      %cst_72 = arith.constant 0.000000e+00 : f32
      %154 = vector.broadcast %cst_72 : f32 to vector<8x1xf32>
      %155 = arith.subf %154, %153 : vector<8x1xf32>
      %156 = math.exp %155 : vector<8x1xf32>
      %cst_73 = arith.constant 1.000000e+00 : f32
      %157 = vector.broadcast %cst_73 : f32 to vector<8x1xf32>
      %158 = arith.addf %157, %156 : vector<8x1xf32>
      %159 = tpu.reciprocal %158 {approx = true} : vector<8x1xf32> -> vector<8x1xf32>
      %160 = vector.broadcast %159 : vector<8x1xf32> to vector<8x128xf32>
      %161 = arith.mulf %160, %140 : vector<8x128xf32>
      %c2_74 = arith.constant 2 : index
      %c0_75 = arith.constant 0 : index
      %c0_76 = arith.constant 0 : index
      %162 = vector.load %arg11[%c2_74, %c0_75, %c0_76] : memref<4x8x128xf32, #tpu.memory_space<vmem>>, vector<1x8x128xf32>
      %163 = vector.shape_cast %162 : vector<1x8x128xf32> to vector<8x128xf32>
      %c1_77 = arith.constant 1 : index
      %c0_78 = arith.constant 0 : index
      %c0_79 = arith.constant 0 : index
      %164 = vector.load %arg6[%c1_77, %c0_78, %c0_79] : memref<3x128x128xbf16, #tpu.memory_space<vmem>>, vector<1x128x128xbf16>
      %165 = vector.shape_cast %164 : vector<1x128x128xbf16> to vector<128x128xbf16>
      %166 = arith.truncf %161 : vector<8x128xf32> to vector<8x128xbf16>
      %cst_80 = arith.constant dense<0.000000e+00> : vector<8x128xf32>
      %167 = tpu.matmul %166, %165, %cst_80 {dimension_numbers = #tpu.dot_dimension_numbers<[1], [0], [0], [1], [0, 0, 1, 1], [], []>} : vector<8x128xbf16>, vector<128x128xbf16>, vector<8x128xf32> -> vector<8x128xf32>
      %c9 = arith.constant 9 : index
      %c0_81 = arith.constant 0 : index
      %168 = vector.load %arg10[%c9, %c0_81] : memref<16x128xf32, #tpu.memory_space<vmem>>, vector<1x128xf32>
      %169 = vector.broadcast %168 : vector<1x128xf32> to vector<8x128xf32>
      %170 = arith.addf %167, %169 : vector<8x128xf32>
      %171 = arith.mulf %163, %170 : vector<8x128xf32>
      %cst_82 = arith.constant 0.000000e+00 : f32
      %172 = vector.broadcast %cst_82 : f32 to vector<8x128xf32>
      %173 = arith.maximumf %171, %172 : vector<8x128xf32>
      %174 = math.absf %171 : vector<8x128xf32>
      %cst_83 = arith.constant 0.000000e+00 : f32
      %175 = vector.broadcast %cst_83 : f32 to vector<8x128xf32>
      %176 = arith.subf %175, %174 : vector<8x128xf32>
      %177 = math.exp %176 : vector<8x128xf32>
      %178 = math.log1p %177 : vector<8x128xf32>
      %179 = arith.addf %173, %178 : vector<8x128xf32>
      %c3_84 = arith.constant 3 : index
      %c0_85 = arith.constant 0 : index
      %c0_86 = arith.constant 0 : index
      %180 = vector.load %arg11[%c3_84, %c0_85, %c0_86] : memref<4x8x128xf32, #tpu.memory_space<vmem>>, vector<1x8x128xf32>
      %181 = vector.shape_cast %180 : vector<1x8x128xf32> to vector<8x128xf32>
      %c2_87 = arith.constant 2 : index
      %c0_88 = arith.constant 0 : index
      %c0_89 = arith.constant 0 : index
      %182 = vector.load %arg6[%c2_87, %c0_88, %c0_89] : memref<3x128x128xbf16, #tpu.memory_space<vmem>>, vector<1x128x128xbf16>
      %183 = vector.shape_cast %182 : vector<1x128x128xbf16> to vector<128x128xbf16>
      %184 = arith.truncf %179 : vector<8x128xf32> to vector<8x128xbf16>
      %cst_90 = arith.constant dense<0.000000e+00> : vector<8x128xf32>
      %185 = tpu.matmul %184, %183, %cst_90 {dimension_numbers = #tpu.dot_dimension_numbers<[1], [0], [0], [1], [0, 0, 1, 1], [], []>} : vector<8x128xbf16>, vector<128x128xbf16>, vector<8x128xf32> -> vector<8x128xf32>
      %c10 = arith.constant 10 : index
      %c0_91 = arith.constant 0 : index
      %186 = vector.load %arg10[%c10, %c0_91] : memref<16x128xf32, #tpu.memory_space<vmem>>, vector<1x128xf32>
      %187 = vector.broadcast %186 : vector<1x128xf32> to vector<8x128xf32>
      %188 = arith.addf %185, %187 : vector<8x128xf32>
      %189 = arith.mulf %181, %188 : vector<8x128xf32>
      %c11 = arith.constant 11 : index
      %c0_92 = arith.constant 0 : index
      %190 = vector.load %arg10[%c11, %c0_92] : memref<16x128xf32, #tpu.memory_space<vmem>>, vector<1x128xf32>
      %c12 = arith.constant 12 : index
      %c0_93 = arith.constant 0 : index
      %191 = vector.load %arg10[%c12, %c0_93] : memref<16x128xf32, #tpu.memory_space<vmem>>, vector<1x128xf32>
      %cst_94 = arith.constant dense<0.000000e+00> : vector<128xf32>
      %192 = vector.multi_reduction <add>, %189, %cst_94 [0] : vector<8x128xf32> to vector<128xf32>
      %193 = vector.shape_cast %192 : vector<128xf32> to vector<1x128xf32>
      %cst_95 = arith.constant 8.000000e+00 : f32
      %194 = vector.broadcast %cst_95 : f32 to vector<1x128xf32>
      %195 = arith.divf %193, %194 : vector<1x128xf32>
      %196 = vector.broadcast %195 : vector<1x128xf32> to vector<8x128xf32>
      %197 = arith.subf %189, %196 : vector<8x128xf32>
      %198 = arith.mulf %197, %197 : vector<8x128xf32>
      %cst_96 = arith.constant dense<0.000000e+00> : vector<128xf32>
      %199 = vector.multi_reduction <add>, %198, %cst_96 [0] : vector<8x128xf32> to vector<128xf32>
      %200 = vector.shape_cast %199 : vector<128xf32> to vector<1x128xf32>
      %cst_97 = arith.constant 8.000000e+00 : f32
      %201 = vector.broadcast %cst_97 : f32 to vector<1x128xf32>
      %202 = arith.divf %200, %201 : vector<1x128xf32>
      %203 = vector.broadcast %195 : vector<1x128xf32> to vector<8x128xf32>
      %204 = arith.subf %189, %203 : vector<8x128xf32>
      %cst_98 = arith.constant 9.99999974E-6 : f32
      %205 = vector.broadcast %cst_98 : f32 to vector<1x128xf32>
      %206 = arith.addf %202, %205 : vector<1x128xf32>
      %207 = math.rsqrt %206 : vector<1x128xf32>
      %208 = vector.broadcast %207 : vector<1x128xf32> to vector<8x128xf32>
      %209 = arith.mulf %204, %208 : vector<8x128xf32>
      %210 = vector.broadcast %190 : vector<1x128xf32> to vector<8x128xf32>
      %211 = arith.mulf %209, %210 : vector<8x128xf32>
      %212 = vector.broadcast %191 : vector<1x128xf32> to vector<8x128xf32>
      %213 = arith.addf %211, %212 : vector<8x128xf32>
      %cst_99 = arith.constant 0.000000e+00 : f32
      %214 = vector.broadcast %cst_99 : f32 to vector<8x128xf32>
      %215 = arith.maximumf %213, %214 : vector<8x128xf32>
      %216 = math.absf %213 : vector<8x128xf32>
      %cst_100 = arith.constant 0.000000e+00 : f32
      %217 = vector.broadcast %cst_100 : f32 to vector<8x128xf32>
      %218 = arith.subf %217, %216 : vector<8x128xf32>
      %219 = math.exp %218 : vector<8x128xf32>
      %220 = math.log1p %219 : vector<8x128xf32>
      %221 = arith.addf %215, %220 : vector<8x128xf32>
      %c0_101 = arith.constant 0 : index
      %c0_102 = arith.constant 0 : index
      %222 = vector.load %arg9[%c0_101, %c0_102] : memref<128x128xbf16, #tpu.memory_space<vmem>>, vector<128x128xbf16>
      %223 = arith.truncf %221 : vector<8x128xf32> to vector<8x128xbf16>
      %cst_103 = arith.constant dense<0.000000e+00> : vector<8x128xf32>
      %224 = tpu.matmul %223, %222, %cst_103 {dimension_numbers = #tpu.dot_dimension_numbers<[1], [0], [0], [1], [0, 0, 1, 1], [], []>} : vector<8x128xbf16>, vector<128x128xbf16>, vector<8x128xf32> -> vector<8x128xf32>
      %c13 = arith.constant 13 : index
      %c0_104 = arith.constant 0 : index
      %225 = vector.load %arg10[%c13, %c0_104] : memref<16x128xf32, #tpu.memory_space<vmem>>, vector<1x128xf32>
      %226 = vector.broadcast %225 : vector<1x128xf32> to vector<8x128xf32>
      %227 = arith.addf %224, %226 : vector<8x128xf32>
      %c0_105 = arith.constant 0 : index
      %c0_106 = arith.constant 0 : index
      %228 = vector.load %arg12[%c0_105, %c0_106] : memref<8x128xf32, #tpu.memory_space<vmem>>, vector<8x128xf32>
      tpu.vector_store %arg12[%c0_105, %c0_106], %227 {strides = array<i32>} : memref<8x128xf32, #tpu.memory_space<vmem>>, vector<8x128xf32>,
    } else {
    }
    return
  }
  func.func @transform_0(%arg0: i32) -> (i32, i32) {
    %c0_i32 = arith.constant 0 : i32
    %c0_i32_0 = arith.constant 0 : i32
    return %arg0, %c0_i32 : i32, i32
  }
  func.func @transform_1(%arg0: i32) -> (i32, i32) {
    %c0_i32 = arith.constant 0 : i32
    %c0_i32_0 = arith.constant 0 : i32
    %c0_i32_1 = arith.constant 0 : i32
    return %c0_i32, %c0_i32_0 : i32, i32
  }
  func.func @transform_2(%arg0: i32) -> (i32, i32) {
    %c0_i32 = arith.constant 0 : i32
    %c0_i32_0 = arith.constant 0 : i32
    %c0_i32_1 = arith.constant 0 : i32
    return %c0_i32, %c0_i32_0 : i32, i32
  }
  func.func @transform_3(%arg0: i32) -> (i32, i32) {
    %c0_i32 = arith.constant 0 : i32
    %c0_i32_0 = arith.constant 0 : i32
    %c0_i32_1 = arith.constant 0 : i32
    return %c0_i32, %c0_i32_0 : i32, i32
  }
  func.func @transform_4(%arg0: i32) -> (i32, i32) {
    %c0_i32 = arith.constant 0 : i32
    %c0_i32_0 = arith.constant 0 : i32
    %c0_i32_1 = arith.constant 0 : i32
    return %c0_i32, %c0_i32_0 : i32, i32
  }
  func.func @transform_5(%arg0: i32) -> (i32, i32, i32) {
    %c0_i32 = arith.constant 0 : i32
    %c0_i32_0 = arith.constant 0 : i32
    %c0_i32_1 = arith.constant 0 : i32
    %c0_i32_2 = arith.constant 0 : i32
    return %c0_i32, %c0_i32_0, %c0_i32_1 : i32, i32, i32
  }
  func.func @transform_6(%arg0: i32) -> (i32, i32) {
    %c0_i32 = arith.constant 0 : i32
    %c0_i32_0 = arith.constant 0 : i32
    %c0_i32_1 = arith.constant 0 : i32
    return %c0_i32, %c0_i32_0 : i32, i32
  }
  func.func @transform_7(%arg0: i32) -> (i32, i32) {
    %c0_i32 = arith.constant 0 : i32
    %c0_i32_0 = arith.constant 0 : i32
    %c0_i32_1 = arith.constant 0 : i32
    return %c0_i32, %c0_i32_0 : i32, i32
  }
  func.func @transform_8(%arg0: i32) -> (i32, i32) {
    %c0_i32 = arith.constant 0 : i32
    %c0_i32_0 = arith.constant 0 : i32
    %c0_i32_1 = arith.constant 0 : i32
    return %c0_i32, %c0_i32_0 : i32, i32
  }
  func.func @transform_9(%arg0: i32) -> (i32, i32) {
    %c0_i32 = arith.constant 0 : i32
    %c0_i32_0 = arith.constant 0 : i32
    %c0_i32_1 = arith.constant 0 : i32
    return %c0_i32, %c0_i32_0 : i32, i32
  }
  func.func @transform_10(%arg0: i32) -> (i32, i32, i32) {
    %c0_i32 = arith.constant 0 : i32
    %c0_i32_0 = arith.constant 0 : i32
    %c0_i32_1 = arith.constant 0 : i32
    %c0_i32_2 = arith.constant 0 : i32
    return %c0_i32, %c0_i32_0, %c0_i32_1 : i32, i32, i32
  }
  func.func @transform_11(%arg0: i32) -> (i32, i32) {
    %c0_i32 = arith.constant 0 : i32
    %c0_i32_0 = arith.constant 0 : i32
    %c0_i32_1 = arith.constant 0 : i32
    return %c0_i32, %c0_i32_0 : i32, i32
  }
}

</mosaic_0001>

<llo_original>
// kernel: _lambda_.1
$region0: #{_lambda_.1}
  #allocation0 [shape = 'u32[]', space=smem, size = 0x4, offset = 0x4, fixed_abs, tag = 'smem constant byte address 0x4 - core index']
  #allocation1 [shape = 'u32[144,128]{1,0:T(1,128)}', space=vmem, size = 0x12000, scoped, tag = 'internal scratch']
  #allocation2 [shape = 'f32[1,8,128]{2,1,0:T(8,128)}', space=vmem, size = 0x1000, scoped, tag = 'scratch operand']
  %s0 = inlined_call_operand.vmem [shape: bf16[512,256], index: 0, kind: input, shape index: {}]
  %s1 = inlined_call_operand.vmem [shape: bf16[256,128], index: 1, kind: input, shape index: {}]
  %s2 = inlined_call_operand.vmem [shape: f32[8,16], index: 2, kind: input, shape index: {}]
  %s3 = inlined_call_operand.vmem [shape: bf16[128,128], index: 3, kind: input, shape index: {}]
  %s4 = inlined_call_operand.vmem [shape: bf16[16,128], index: 4, kind: input, shape index: {}]
  %s5 = inlined_call_operand.vmem [shape: bf16[3,128,128], index: 5, kind: input, shape index: {}]
  %s6 = inlined_call_operand.vmem [shape: bf16[128,128], index: 6, kind: input, shape index: {}]
  %s7 = inlined_call_operand.vmem [shape: bf16[128,128], index: 7, kind: input, shape index: {}]
  %s8 = inlined_call_operand.vmem [shape: bf16[128,128], index: 8, kind: input, shape index: {}]
  %s9 = inlined_call_operand.vmem [shape: f32[16,128], index: 9, kind: input, shape index: {}]
  %s10 = inlined_call_operand.vmem [shape: f32[4,8,128], index: 10, kind: input, shape index: {}]
  %s11 = inlined_call_operand.hbm [shape: f32[8,128], index: 11, kind: output, shape index: {}]
  %s12 = sld [smem:[#allocation0]]
  $region58: #{_lambda_.1} parent=0
    _
  %s14 = ssub.s32 1, %s12
  %s15 = scalar_select 0, %s14, %s12
  $region1: #{_lambda_.1} parent=0
    #allocation3 [shape = 'u8[4096]{0}', space=vmem, size = 0x1000, scoped, tag = 'output window, operand 0, single buffered']
    #allocation4 [shape = 's32[1]{0}', space=sflag, size = 0x4, scoped, tag = 'scoped memory for _lambda_.1']
    %16 = vsyncpa [#allocation4], 0
    // Predicated region
    $region2: #{_lambda_.1} parent=1 // pred_check
      _
    $region3: #{_lambda_.1} parent=1 // pred_check_branch
      %18 = sbr.rel (0) target = $region5
    $region4: #{_lambda_.1} parent=1 // pred_region
      _
    $region5: #{_lambda_.1} parent=1 // pred_fallthru
      _
    // Predicated region
    $region6: #{_lambda_.1} parent=1 // pred_check
      _
    $region7: #{_lambda_.1} parent=1 // pred_check_branch
      %20 = sbr.rel (0) target = $region9
    $region8: #{_lambda_.1} parent=1 // pred_region
      _
    $region9: #{_lambda_.1} parent=1 // pred_fallthru
      _
    // Predicated region
    $region10: #{_lambda_.1} parent=1 // pred_check
      _
    $region11: #{_lambda_.1} parent=1 // pred_check_branch
      %22 = sbr.rel (0) target = $region13
    $region12: #{_lambda_.1} parent=1 // pred_region
      _
    $region13: #{_lambda_.1} parent=1 // pred_fallthru
      _
    // Predicated region
    $region14: #{_lambda_.1} parent=1 // pred_check
      _
    $region15: #{_lambda_.1} parent=1 // pred_check_branch
      %24 = sbr.rel (0) target = $region17
    $region16: #{_lambda_.1} parent=1 // pred_region
      _
    $region17: #{_lambda_.1} parent=1 // pred_fallthru
      _
    // Predicated region
    $region18: #{_lambda_.1} parent=1 // pred_check
      _
    $region19: #{_lambda_.1} parent=1 // pred_check_branch
      %26 = sbr.rel (0) target = $region21
    $region20: #{_lambda_.1} parent=1 // pred_region
      _
    $region21: #{_lambda_.1} parent=1 // pred_fallthru
      _
    // Predicated region
    $region22: #{_lambda_.1} parent=1 // pred_check
      _
    $region23: #{_lambda_.1} parent=1 // pred_check_branch
      %28 = sbr.rel (0) target = $region25
    $region24: #{_lambda_.1} parent=1 // pred_region
      _
    $region25: #{_lambda_.1} parent=1 // pred_fallthru
      _
    // Predicated region
    $region26: #{_lambda_.1} parent=1 // pred_check
      _
    $region27: #{_lambda_.1} parent=1 // pred_check_branch
      %30 = sbr.rel (0) target = $region29
    $region28: #{_lambda_.1} parent=1 // pred_region
      _
    $region29: #{_lambda_.1} parent=1 // pred_fallthru
      _
    // Predicated region
    $region30: #{_lambda_.1} parent=1 // pred_check
      _
    $region31: #{_lambda_.1} parent=1 // pred_check_branch
      %32 = sbr.rel (0) target = $region33
    $region32: #{_lambda_.1} parent=1 // pred_region
      _
    $region33: #{_lambda_.1} parent=1 // pred_fallthru
      _
    // Predicated region
    $region34: #{_lambda_.1} parent=1 // pred_check
      _
    $region35: #{_lambda_.1} parent=1 // pred_check_branch
      %34 = sbr.rel (0) target = $region37
    $region36: #{_lambda_.1} parent=1 // pred_region
      _
    $region37: #{_lambda_.1} parent=1 // pred_fallthru
      _
    // Predicated region
    $region38: #{_lambda_.1} parent=1 // pred_check
      _
    $region39: #{_lambda_.1} parent=1 // pred_check_branch
      %36 = sbr.rel (0) target = $region41
    $region40: #{_lambda_.1} parent=1 // pred_region
      _
    $region41: #{_lambda_.1} parent=1 // pred_fallthru
      _
    // Predicated region
    $region42: #{_lambda_.1} parent=1 // pred_check
      _
    $region43: #{_lambda_.1} parent=1 // pred_check_branch
      %38 = sbr.rel (0) target = $region45
    $region44: #{_lambda_.1} parent=1 // pred_region
      _
    $region45: #{_lambda_.1} parent=1 // pred_fallthru
      _
    %v40 = vld [vmem:[%s0] sm:$0xff]
    %v41 = vld [vmem:[%s0 + $0x8] sm:$0xff]
    %v42 = vld [vmem:[%s0 + $0x10] sm:$0xff]
    %v43 = vld [vmem:[%s0 + $0x18] sm:$0xff]
    %v44 = vld [vmem:[%s0 + $0x20] sm:$0xff]
    %v45 = vld [vmem:[%s0 + $0x28] sm:$0xff]
    %v46 = vld [vmem:[%s0 + $0x30] sm:$0xff]
    %v47 = vld [vmem:[%s0 + $0x38] sm:$0xff]
    %v48 = vld [vmem:[%s0 + $0x40] sm:$0xff]
    %v49 = vld [vmem:[%s0 + $0x48] sm:$0xff]
    %v50 = vld [vmem:[%s0 + $0x50] sm:$0xff]
    %v51 = vld [vmem:[%s0 + $0x58] sm:$0xff]
    %v52 = vld [vmem:[%s0 + $0x60] sm:$0xff]
    %v53 = vld [vmem:[%s0 + $0x68] sm:$0xff]
    %v54 = vld [vmem:[%s0 + $0x70] sm:$0xff]
    %v55 = vld [vmem:[%s0 + $0x78] sm:$0xff]
    %v56 = vld [vmem:[%s0 + $0x80] sm:$0xff]
    %v57 = vld [vmem:[%s0 + $0x88] sm:$0xff]
    %v58 = vld [vmem:[%s0 + $0x90] sm:$0xff]
    %v59 = vld [vmem:[%s0 + $0x98] sm:$0xff]
    %v60 = vld [vmem:[%s0 + $0xa0] sm:$0xff]
    %v61 = vld [vmem:[%s0 + $0xa8] sm:$0xff]
    %v62 = vld [vmem:[%s0 + $0xb0] sm:$0xff]
    %v63 = vld [vmem:[%s0 + $0xb8] sm:$0xff]
    %v64 = vld [vmem:[%s0 + $0xc0] sm:$0xff]
    %v65 = vld [vmem:[%s0 + $0xc8] sm:$0xff]
    %v66 = vld [vmem:[%s0 + $0xd0] sm:$0xff]
    %v67 = vld [vmem:[%s0 + $0xd8] sm:$0xff]
    %v68 = vld [vmem:[%s0 + $0xe0] sm:$0xff]
    %v69 = vld [vmem:[%s0 + $0xe8] sm:$0xff]
    %v70 = vld [vmem:[%s0 + $0xf0] sm:$0xff]
    %v71 = vld [vmem:[%s0 + $0xf8] sm:$0xff]
    %v72 = vld [vmem:[%s0 + $0x100] sm:$0xff]
    %v73 = vld [vmem:[%s0 + $0x108] sm:$0xff]
    %v74 = vld [vmem:[%s0 + $0x110] sm:$0xff]
    %v75 = vld [vmem:[%s0 + $0x118] sm:$0xff]
    %v76 = vld [vmem:[%s0 + $0x120] sm:$0xff]
    %v77 = vld [vmem:[%s0 + $0x128] sm:$0xff]
    %v78 = vld [vmem:[%s0 + $0x130] sm:$0xff]
    %v79 = vld [vmem:[%s0 + $0x138] sm:$0xff]
    %v80 = vld [vmem:[%s0 + $0x140] sm:$0xff]
    %v81 = vld [vmem:[%s0 + $0x148] sm:$0xff]
    %v82 = vld [vmem:[%s0 + $0x150] sm:$0xff]
    %v83 = vld [vmem:[%s0 + $0x158] sm:$0xff]
    %v84 = vld [vmem:[%s0 + $0x160] sm:$0xff]
    %v85 = vld [vmem:[%s0 + $0x168] sm:$0xff]
    %v86 = vld [vmem:[%s0 + $0x170] sm:$0xff]
    %v87 = vld [vmem:[%s0 + $0x178] sm:$0xff]
    %v88 = vld [vmem:[%s0 + $0x180] sm:$0xff]
    %v89 = vld [vmem:[%s0 + $0x188] sm:$0xff]
    %v90 = vld [vmem:[%s0 + $0x190] sm:$0xff]
    %v91 = vld [vmem:[%s0 + $0x198] sm:$0xff]
    %v92 = vld [vmem:[%s0 + $0x1a0] sm:$0xff]
    %v93 = vld [vmem:[%s0 + $0x1a8] sm:$0xff]
    %v94 = vld [vmem:[%s0 + $0x1b0] sm:$0xff]
    %v95 = vld [vmem:[%s0 + $0x1b8] sm:$0xff]
    %v96 = vld [vmem:[%s0 + $0x1c0] sm:$0xff]
    %v97 = vld [vmem:[%s0 + $0x1c8] sm:$0xff]
    %v98 = vld [vmem:[%s0 + $0x1d0] sm:$0xff]
    %v99 = vld [vmem:[%s0 + $0x1d8] sm:$0xff]
    %v100 = vld [vmem:[%s0 + $0x1e0] sm:$0xff]
    %v101 = vld [vmem:[%s0 + $0x1e8] sm:$0xff]
    %v102 = vld [vmem:[%s0 + $0x1f0] sm:$0xff]
    %v103 = vld [vmem:[%s0 + $0x1f8] sm:$0xff]
    %v104 = vld [vmem:[%s1] sm:$0xf]
    %v105 = vld [vmem:[%s1 + $0x4] sm:$0xf]
    %v106 = vld [vmem:[%s1 + $0x8] sm:$0xf]
    %v107 = vld [vmem:[%s1 + $0xc] sm:$0xf]
    %v108 = vld [vmem:[%s1 + $0x10] sm:$0xf]
    %v109 = vld [vmem:[%s1 + $0x14] sm:$0xf]
    %v110 = vld [vmem:[%s1 + $0x18] sm:$0xf]
    %v111 = vld [vmem:[%s1 + $0x1c] sm:$0xf]
    %v112 = vld [vmem:[%s1 + $0x20] sm:$0xf]
    %v113 = vld [vmem:[%s1 + $0x24] sm:$0xf]
    %v114 = vld [vmem:[%s1 + $0x28] sm:$0xf]
    %v115 = vld [vmem:[%s1 + $0x2c] sm:$0xf]
    %v116 = vld [vmem:[%s1 + $0x30] sm:$0xf]
    %v117 = vld [vmem:[%s1 + $0x34] sm:$0xf]
    %v118 = vld [vmem:[%s1 + $0x38] sm:$0xf]
    %v119 = vld [vmem:[%s1 + $0x3c] sm:$0xf]
    %v120 = vld [vmem:[%s1 + $0x40] sm:$0xf]
    %v121 = vld [vmem:[%s1 + $0x44] sm:$0xf]
    %v122 = vld [vmem:[%s1 + $0x48] sm:$0xf]
    %v123 = vld [vmem:[%s1 + $0x4c] sm:$0xf]
    %v124 = vld [vmem:[%s1 + $0x50] sm:$0xf]
    %v125 = vld [vmem:[%s1 + $0x54] sm:$0xf]
    %v126 = vld [vmem:[%s1 + $0x58] sm:$0xf]
    %v127 = vld [vmem:[%s1 + $0x5c] sm:$0xf]
    %v128 = vld [vmem:[%s1 + $0x60] sm:$0xf]
    %v129 = vld [vmem:[%s1 + $0x64] sm:$0xf]
    %v130 = vld [vmem:[%s1 + $0x68] sm:$0xf]
    %v131 = vld [vmem:[%s1 + $0x6c] sm:$0xf]
    %v132 = vld [vmem:[%s1 + $0x70] sm:$0xf]
    %v133 = vld [vmem:[%s1 + $0x74] sm:$0xf]
    %v134 = vld [vmem:[%s1 + $0x78] sm:$0xf]
    %v135 = vld [vmem:[%s1 + $0x7c] sm:$0xf]
    %v200 = vunpack.c.l.b16 %v40
    %v201 = vunpack.c.h.b16 %v40
    %v202 = vunpack.c.l.b16 %v41
    %v203 = vunpack.c.h.b16 %v41
    %v204 = vunpack.c.l.b16 %v42
    %v205 = vunpack.c.h.b16 %v42
    %v206 = vunpack.c.l.b16 %v43
    %v207 = vunpack.c.h.b16 %v43
    %v208 = vunpack.c.l.b16 %v44
    %v209 = vunpack.c.h.b16 %v44
    %v210 = vunpack.c.l.b16 %v45
    %v211 = vunpack.c.h.b16 %v45
    %v212 = vunpack.c.l.b16 %v46
    %v213 = vunpack.c.h.b16 %v46
    %v214 = vunpack.c.l.b16 %v47
    %v215 = vunpack.c.h.b16 %v47
    %v216 = vunpack.c.l.b16 %v48
    %v217 = vunpack.c.h.b16 %v48
    %v218 = vunpack.c.l.b16 %v49
    %v219 = vunpack.c.h.b16 %v49
    %v220 = vunpack.c.l.b16 %v50
    %v221 = vunpack.c.h.b16 %v50
    %v222 = vunpack.c.l.b16 %v51
    %v223 = vunpack.c.h.b16 %v51
    %v224 = vunpack.c.l.b16 %v52
    %v225 = vunpack.c.h.b16 %v52
    %v226 = vunpack.c.l.b16 %v53
    %v227 = vunpack.c.h.b16 %v53
    %v228 = vunpack.c.l.b16 %v54
    %v229 = vunpack.c.h.b16 %v54
    %v230 = vunpack.c.l.b16 %v55
    %v231 = vunpack.c.h.b16 %v55
    %v232 = vunpack.c.l.b16 %v56
    %v233 = vunpack.c.h.b16 %v56
    %v234 = vunpack.c.l.b16 %v57
    %v235 = vunpack.c.h.b16 %v57
    %v236 = vunpack.c.l.b16 %v58
    %v237 = vunpack.c.h.b16 %v58
    %v238 = vunpack.c.l.b16 %v59
    %v239 = vunpack.c.h.b16 %v59
    %v240 = vunpack.c.l.b16 %v60
    %v241 = vunpack.c.h.b16 %v60
    %v242 = vunpack.c.l.b16 %v61
    %v243 = vunpack.c.h.b16 %v61
    %v244 = vunpack.c.l.b16 %v62
    %v245 = vunpack.c.h.b16 %v62
    %v246 = vunpack.c.l.b16 %v63
    %v247 = vunpack.c.h.b16 %v63
    %v248 = vunpack.c.l.b16 %v64
    %v249 = vunpack.c.h.b16 %v64
    %v250 = vunpack.c.l.b16 %v65
    %v251 = vunpack.c.h.b16 %v65
    %v252 = vunpack.c.l.b16 %v66
    %v253 = vunpack.c.h.b16 %v66
    %v254 = vunpack.c.l.b16 %v67
    %v255 = vunpack.c.h.b16 %v67
    %v256 = vunpack.c.l.b16 %v68
    %v257 = vunpack.c.h.b16 %v68
    %v258 = vunpack.c.l.b16 %v69
    %v259 = vunpack.c.h.b16 %v69
    %v260 = vunpack.c.l.b16 %v70
    %v261 = vunpack.c.h.b16 %v70
    %v262 = vunpack.c.l.b16 %v71
    %v263 = vunpack.c.h.b16 %v71
    %v264 = vunpack.c.l.b16 %v72
    %v265 = vunpack.c.h.b16 %v72
    %v266 = vunpack.c.l.b16 %v73
    %v267 = vunpack.c.h.b16 %v73
    %v268 = vunpack.c.l.b16 %v74
    %v269 = vunpack.c.h.b16 %v74
    %v270 = vunpack.c.l.b16 %v75
    %v271 = vunpack.c.h.b16 %v75
    %v272 = vunpack.c.l.b16 %v76
    %v273 = vunpack.c.h.b16 %v76
    %v274 = vunpack.c.l.b16 %v77
    %v275 = vunpack.c.h.b16 %v77
    %v276 = vunpack.c.l.b16 %v78
    %v277 = vunpack.c.h.b16 %v78
    %v278 = vunpack.c.l.b16 %v79
    %v279 = vunpack.c.h.b16 %v79
    %v280 = vunpack.c.l.b16 %v80
    %v281 = vunpack.c.h.b16 %v80
    %v282 = vunpack.c.l.b16 %v81
    %v283 = vunpack.c.h.b16 %v81
    %v284 = vunpack.c.l.b16 %v82
    %v285 = vunpack.c.h.b16 %v82
    %v286 = vunpack.c.l.b16 %v83
    %v287 = vunpack.c.h.b16 %v83
    %v288 = vunpack.c.l.b16 %v84
    %v289 = vunpack.c.h.b16 %v84
    %v290 = vunpack.c.l.b16 %v85
    %v291 = vunpack.c.h.b16 %v85
    %v292 = vunpack.c.l.b16 %v86
    %v293 = vunpack.c.h.b16 %v86
    %v294 = vunpack.c.l.b16 %v87
    %v295 = vunpack.c.h.b16 %v87
    %v296 = vunpack.c.l.b16 %v88
    %v297 = vunpack.c.h.b16 %v88
    %v298 = vunpack.c.l.b16 %v89
    %v299 = vunpack.c.h.b16 %v89
    %v300 = vunpack.c.l.b16 %v90
    %v301 = vunpack.c.h.b16 %v90
    %v302 = vunpack.c.l.b16 %v91
    %v303 = vunpack.c.h.b16 %v91
    %v304 = vunpack.c.l.b16 %v92
    %v305 = vunpack.c.h.b16 %v92
    %v306 = vunpack.c.l.b16 %v93
    %v307 = vunpack.c.h.b16 %v93
    %v308 = vunpack.c.l.b16 %v94
    %v309 = vunpack.c.h.b16 %v94
    %v310 = vunpack.c.l.b16 %v95
    %v311 = vunpack.c.h.b16 %v95
    %v312 = vunpack.c.l.b16 %v96
    %v313 = vunpack.c.h.b16 %v96
    %v314 = vunpack.c.l.b16 %v97
    %v315 = vunpack.c.h.b16 %v97
    %v316 = vunpack.c.l.b16 %v98
    %v317 = vunpack.c.h.b16 %v98
    %v318 = vunpack.c.l.b16 %v99
    %v319 = vunpack.c.h.b16 %v99
    %v320 = vunpack.c.l.b16 %v100
    %v321 = vunpack.c.h.b16 %v100
    %v322 = vunpack.c.l.b16 %v101
    %v323 = vunpack.c.h.b16 %v101
    %v324 = vunpack.c.l.b16 %v102
    %v325 = vunpack.c.h.b16 %v102
    %v326 = vunpack.c.l.b16 %v103
    %v327 = vunpack.c.h.b16 %v103
    %v328 = vpack.c.b16 %v202, %v200
    %v329 = vpack.c.b16 %v203, %v201
    %v330 = vpack.c.b16 %v206, %v204
    %v331 = vpack.c.b16 %v207, %v205
    %v332 = vpack.c.b16 %v210, %v208
    %v333 = vpack.c.b16 %v211, %v209
    %v334 = vpack.c.b16 %v214, %v212
    %v335 = vpack.c.b16 %v215, %v213
    %v336 = vpack.c.b16 %v218, %v216
    %v337 = vpack.c.b16 %v219, %v217
    %v338 = vpack.c.b16 %v222, %v220
    %v339 = vpack.c.b16 %v223, %v221
    %v340 = vpack.c.b16 %v226, %v224
    %v341 = vpack.c.b16 %v227, %v225
    %v342 = vpack.c.b16 %v230, %v228
    %v343 = vpack.c.b16 %v231, %v229
    %v344 = vpack.c.b16 %v234, %v232
    %v345 = vpack.c.b16 %v235, %v233
    %v346 = vpack.c.b16 %v238, %v236
    %v347 = vpack.c.b16 %v239, %v237
    %v348 = vpack.c.b16 %v242, %v240
    %v349 = vpack.c.b16 %v243, %v241
    %v350 = vpack.c.b16 %v246, %v244
    %v351 = vpack.c.b16 %v247, %v245
    %v352 = vpack.c.b16 %v250, %v248
    %v353 = vpack.c.b16 %v251, %v249
    %v354 = vpack.c.b16 %v254, %v252
    %v355 = vpack.c.b16 %v255, %v253
    %v356 = vpack.c.b16 %v258, %v256
    %v357 = vpack.c.b16 %v259, %v257
    %v358 = vpack.c.b16 %v262, %v260
    %v359 = vpack.c.b16 %v263, %v261
    %v360 = vpack.c.b16 %v266, %v264
    %v361 = vpack.c.b16 %v267, %v265
    %v362 = vpack.c.b16 %v270, %v268
    %v363 = vpack.c.b16 %v271, %v269
    %v364 = vpack.c.b16 %v274, %v272
    %v365 = vpack.c.b16 %v275, %v273
    %v366 = vpack.c.b16 %v278, %v276
    %v367 = vpack.c.b16 %v279, %v277
    %v368 = vpack.c.b16 %v282, %v280
    %v369 = vpack.c.b16 %v283, %v281
    %v370 = vpack.c.b16 %v286, %v284
    %v371 = vpack.c.b16 %v287, %v285
    %v372 = vpack.c.b16 %v290, %v288
    %v373 = vpack.c.b16 %v291, %v289
    %v374 = vpack.c.b16 %v294, %v292
    %v375 = vpack.c.b16 %v295, %v293
    %v376 = vpack.c.b16 %v298, %v296
    %v377 = vpack.c.b16 %v299, %v297
    %v378 = vpack.c.b16 %v302, %v300
    %v379 = vpack.c.b16 %v303, %v301
    %v380 = vpack.c.b16 %v306, %v304
    %v381 = vpack.c.b16 %v307, %v305
    %v382 = vpack.c.b16 %v310, %v308
    %v383 = vpack.c.b16 %v311, %v309
    %v384 = vpack.c.b16 %v314, %v312
    %v385 = vpack.c.b16 %v315, %v313
    %v386 = vpack.c.b16 %v318, %v316
    %v387 = vpack.c.b16 %v319, %v317
    %v388 = vpack.c.b16 %v322, %v320
    %v389 = vpack.c.b16 %v323, %v321
    %v390 = vpack.c.b16 %v326, %v324
    %v391 = vpack.c.b16 %v327, %v325
    %v488 = vunpack.c.l.b16 %v104
    %v489 = vunpack.c.l.b16 %v105
    %v490 = vunpack.c.l.b16 %v106
    %v491 = vunpack.c.l.b16 %v107
    %v492 = vunpack.c.l.b16 %v108
    %v493 = vunpack.c.l.b16 %v109
    %v494 = vunpack.c.l.b16 %v110
    %v495 = vunpack.c.l.b16 %v111
    %v496 = vunpack.c.l.b16 %v112
    %v497 = vunpack.c.l.b16 %v113
    %v498 = vunpack.c.l.b16 %v114
    %v499 = vunpack.c.l.b16 %v115
    %v500 = vunpack.c.l.b16 %v116
    %v501 = vunpack.c.l.b16 %v117
    %v502 = vunpack.c.l.b16 %v118
    %v503 = vunpack.c.l.b16 %v119
    %v504 = vunpack.c.l.b16 %v120
    %v505 = vunpack.c.l.b16 %v121
    %v506 = vunpack.c.l.b16 %v122
    %v507 = vunpack.c.l.b16 %v123
    %v508 = vunpack.c.l.b16 %v124
    %v509 = vunpack.c.l.b16 %v125
    %v510 = vunpack.c.l.b16 %v126
    %v511 = vunpack.c.l.b16 %v127
    %v512 = vunpack.c.l.b16 %v128
    %v513 = vunpack.c.l.b16 %v129
    %v514 = vunpack.c.l.b16 %v130
    %v515 = vunpack.c.l.b16 %v131
    %v516 = vunpack.c.l.b16 %v132
    %v517 = vunpack.c.l.b16 %v133
    %v518 = vunpack.c.l.b16 %v134
    %v519 = vunpack.c.l.b16 %v135
    %v520 = vpack.c.b16 %v489, %v488
    %v521 = vpack.c.b16 %v491, %v490
    %v522 = vpack.c.b16 %v493, %v492
    %v523 = vpack.c.b16 %v495, %v494
    %v524 = vpack.c.b16 %v497, %v496
    %v525 = vpack.c.b16 %v499, %v498
    %v526 = vpack.c.b16 %v501, %v500
    %v527 = vpack.c.b16 %v503, %v502
    %v528 = vpack.c.b16 %v505, %v504
    %v529 = vpack.c.b16 %v507, %v506
    %v530 = vpack.c.b16 %v509, %v508
    %v531 = vpack.c.b16 %v511, %v510
    %v532 = vpack.c.b16 %v513, %v512
    %v533 = vpack.c.b16 %v515, %v514
    %v534 = vpack.c.b16 %v517, %v516
    %v535 = vpack.c.b16 %v519, %v518
    %552 = vmatprep.subr.bf16.mxu0 0
    %553 = vmatpush1.bf16.msra.mxu0 %v527
    %554 = vmatprep.subr.bf16.mxu0 0
    %555 = vmatpush1.bf16.msra.mxu0 %v526
    %556 = vmatprep.subr.bf16.mxu0 0
    %557 = vmatpush1.bf16.msra.mxu0 %v525
    %558 = vmatprep.subr.bf16.mxu0 0
    %559 = vmatpush1.bf16.msra.mxu0 %v524
    %560 = vmatprep.subr.bf16.mxu0 0
    %561 = vmatpush1.bf16.msra.mxu0 %v523
    %562 = vmatprep.subr.bf16.mxu0 0
    %563 = vmatpush1.bf16.msra.mxu0 %v522
    %564 = vmatprep.subr.bf16.mxu0 0
    %565 = vmatpush1.bf16.msra.mxu0 %v521
    %566 = vmatprep.subr.bf16.mxu0 0
    %567 = vmatpush1.bf16.msra.mxu0 %v520
    %568 = vmatprep.subr.bf16.mxu0 0
    %569 = vmatpush2.bf16.msra.mxu0 %v535
    %570 = vmatprep.subr.bf16.mxu0 0
    %571 = vmatpush2.bf16.msra.mxu0 %v534
    %572 = vmatprep.subr.bf16.mxu0 0
    %573 = vmatpush2.bf16.msra.mxu0 %v533
    %574 = vmatprep.subr.bf16.mxu0 0
    %575 = vmatpush2.bf16.msra.mxu0 %v532
    %576 = vmatprep.subr.bf16.mxu0 0
    %577 = vmatpush2.bf16.msra.mxu0 %v531
    %578 = vmatprep.subr.bf16.mxu0 0
    %579 = vmatpush2.bf16.msra.mxu0 %v530
    %580 = vmatprep.subr.bf16.mxu0 0
    %581 = vmatpush2.bf16.msra.mxu0 %v529
    %582 = vmatprep.subr.bf16.mxu0 0
    %583 = vmatpush2.bf16.msra.mxu0 %v528
    %584 = vmatprep.mubr.bf16.mxu0 %v329
    %585 = vmatmul.mubr.bf16.gmra.mxu0 %v328
    %v586 = vpop.f32.mrf.mxu0
    %v587 = vadd.f32 0.0, %v586
    %v588 = vpop.f32.mrf.mxu0
    %v589 = vpop.f32.mrf.mxu0
    %v590 = vadd.f32 0.0, %v589
    %v591 = vpop.f32.mrf.mxu0
    %592 = vmatprep.mubr.bf16.mxu0 %v331
    %593 = vmatmul.mubr.bf16.gmra.mxu0 %v330
    %v594 = vpop.f32.mrf.mxu0
    %v595 = vadd.f32 0.0, %v594
    %v596 = vpop.f32.mrf.mxu0
    %v597 = vpop.f32.mrf.mxu0
    %v598 = vadd.f32 0.0, %v597
    %v599 = vpop.f32.mrf.mxu0
    %600 = vmatprep.mubr.bf16.mxu0 %v333
    %601 = vmatmul.mubr.bf16.gmra.mxu0 %v332
    %v602 = vpop.f32.mrf.mxu0
    %v603 = vadd.f32 0.0, %v602
    %v604 = vpop.f32.mrf.mxu0
    %v605 = vpop.f32.mrf.mxu0
    %v606 = vadd.f32 0.0, %v605
    %v607 = vpop.f32.mrf.mxu0
    %608 = vmatprep.mubr.bf16.mxu0 %v335
    %609 = vmatmul.mubr.bf16.gmra.mxu0 %v334
    %v610 = vpop.f32.mrf.mxu0
    %v611 = vadd.f32 0.0, %v610
    %v612 = vpop.f32.mrf.mxu0
    %v613 = vpop.f32.mrf.mxu0
    %v614 = vadd.f32 0.0, %v613
    %v615 = vpop.f32.mrf.mxu0
    %616 = vmatprep.mubr.bf16.mxu0 %v337
    %617 = vmatmul.mubr.bf16.gmra.mxu0 %v336
    %v618 = vpop.f32.mrf.mxu0
    %v619 = vadd.f32 0.0, %v618
    %v620 = vpop.f32.mrf.mxu0
    %v621 = vpop.f32.mrf.mxu0
    %v622 = vadd.f32 0.0, %v621
    %v623 = vpop.f32.mrf.mxu0
    %624 = vmatprep.mubr.bf16.mxu0 %v339
    %625 = vmatmul.mubr.bf16.gmra.mxu0 %v338
    %v626 = vpop.f32.mrf.mxu0
    %v627 = vadd.f32 0.0, %v626
    %v628 = vpop.f32.mrf.mxu0
    %v629 = vpop.f32.mrf.mxu0
    %v630 = vadd.f32 0.0, %v629
    %v631 = vpop.f32.mrf.mxu0
    %632 = vmatprep.mubr.bf16.mxu0 %v341
    %633 = vmatmul.mubr.bf16.gmra.mxu0 %v340
    %v634 = vpop.f32.mrf.mxu0
    %v635 = vadd.f32 0.0, %v634
    %v636 = vpop.f32.mrf.mxu0
    %v637 = vpop.f32.mrf.mxu0
    %v638 = vadd.f32 0.0, %v637
    %v639 = vpop.f32.mrf.mxu0
    %640 = vmatprep.mubr.bf16.mxu0 %v343
    %641 = vmatmul.mubr.bf16.gmra.mxu0 %v342
    %v642 = vpop.f32.mrf.mxu0
    %v643 = vadd.f32 0.0, %v642
    %v644 = vpop.f32.mrf.mxu0
    %v645 = vpop.f32.mrf.mxu0
    %v646 = vadd.f32 0.0, %v645
    %v647 = vpop.f32.mrf.mxu0
    %648 = vmatprep.mubr.bf16.mxu0 %v345
    %649 = vmatmul.mubr.bf16.gmra.mxu0 %v344
    %v650 = vpop.f32.mrf.mxu0
    %v651 = vadd.f32 0.0, %v650
    %v652 = vpop.f32.mrf.mxu0
    %v653 = vpop.f32.mrf.mxu0
    %v654 = vadd.f32 0.0, %v653
    %v655 = vpop.f32.mrf.mxu0
    %656 = vmatprep.mubr.bf16.mxu0 %v347
    %657 = vmatmul.mubr.bf16.gmra.mxu0 %v346
    %v658 = vpop.f32.mrf.mxu0
    %v659 = vadd.f32 0.0, %v658
    %v660 = vpop.f32.mrf.mxu0
    %v661 = vpop.f32.mrf.mxu0
    %v662 = vadd.f32 0.0, %v661
    %v663 = vpop.f32.mrf.mxu0
    %664 = vmatprep.mubr.bf16.mxu0 %v349
    %665 = vmatmul.mubr.bf16.gmra.mxu0 %v348
    %v666 = vpop.f32.mrf.mxu0
    %v667 = vadd.f32 0.0, %v666
    %v668 = vpop.f32.mrf.mxu0
    %v669 = vpop.f32.mrf.mxu0
    %v670 = vadd.f32 0.0, %v669
    %v671 = vpop.f32.mrf.mxu0
    %672 = vmatprep.mubr.bf16.mxu0 %v351
    %673 = vmatmul.mubr.bf16.gmra.mxu0 %v350
    %v674 = vpop.f32.mrf.mxu0
    %v675 = vadd.f32 0.0, %v674
    %v676 = vpop.f32.mrf.mxu0
    %v677 = vpop.f32.mrf.mxu0
    %v678 = vadd.f32 0.0, %v677
    %v679 = vpop.f32.mrf.mxu0
    %680 = vmatprep.mubr.bf16.mxu0 %v353
    %681 = vmatmul.mubr.bf16.gmra.mxu0 %v352
    %v682 = vpop.f32.mrf.mxu0
    %v683 = vadd.f32 0.0, %v682
    %v684 = vpop.f32.mrf.mxu0
    %v685 = vpop.f32.mrf.mxu0
    %v686 = vadd.f32 0.0, %v685
    %v687 = vpop.f32.mrf.mxu0
    %688 = vmatprep.mubr.bf16.mxu0 %v355
    %689 = vmatmul.mubr.bf16.gmra.mxu0 %v354
    %v690 = vpop.f32.mrf.mxu0
    %v691 = vadd.f32 0.0, %v690
    %v692 = vpop.f32.mrf.mxu0
    %v693 = vpop.f32.mrf.mxu0
    %v694 = vadd.f32 0.0, %v693
    %v695 = vpop.f32.mrf.mxu0
    %696 = vmatprep.mubr.bf16.mxu0 %v357
    %697 = vmatmul.mubr.bf16.gmra.mxu0 %v356
    %v698 = vpop.f32.mrf.mxu0
    %v699 = vadd.f32 0.0, %v698
    %v700 = vpop.f32.mrf.mxu0
    %v701 = vpop.f32.mrf.mxu0
    %v702 = vadd.f32 0.0, %v701
    %v703 = vpop.f32.mrf.mxu0
    %704 = vmatprep.mubr.bf16.mxu0 %v359
    %705 = vmatmul.mubr.bf16.gmra.mxu0 %v358
    %v706 = vpop.f32.mrf.mxu0
    %v707 = vadd.f32 0.0, %v706
    %v708 = vpop.f32.mrf.mxu0
    %v709 = vpop.f32.mrf.mxu0
    %v710 = vadd.f32 0.0, %v709
    %v711 = vpop.f32.mrf.mxu0
    %712 = vmatprep.mubr.bf16.mxu0 %v361
    %713 = vmatmul.mubr.bf16.gmra.mxu0 %v360
    %v714 = vpop.f32.mrf.mxu0
    %v715 = vadd.f32 0.0, %v714
    %v716 = vpop.f32.mrf.mxu0
    %v717 = vpop.f32.mrf.mxu0
    %v718 = vadd.f32 0.0, %v717
    %v719 = vpop.f32.mrf.mxu0
    %720 = vmatprep.mubr.bf16.mxu0 %v363
    %721 = vmatmul.mubr.bf16.gmra.mxu0 %v362
    %v722 = vpop.f32.mrf.mxu0
    %v723 = vadd.f32 0.0, %v722
    %v724 = vpop.f32.mrf.mxu0
    %v725 = vpop.f32.mrf.mxu0
    %v726 = vadd.f32 0.0, %v725
    %v727 = vpop.f32.mrf.mxu0
    %728 = vmatprep.mubr.bf16.mxu0 %v365
    %729 = vmatmul.mubr.bf16.gmra.mxu0 %v364
    %v730 = vpop.f32.mrf.mxu0
    %v731 = vadd.f32 0.0, %v730
    %v732 = vpop.f32.mrf.mxu0
    %v733 = vpop.f32.mrf.mxu0
    %v734 = vadd.f32 0.0, %v733
    %v735 = vpop.f32.mrf.mxu0
    %736 = vmatprep.mubr.bf16.mxu0 %v367
    %737 = vmatmul.mubr.bf16.gmra.mxu0 %v366
    %v738 = vpop.f32.mrf.mxu0
    %v739 = vadd.f32 0.0, %v738
    %v740 = vpop.f32.mrf.mxu0
    %v741 = vpop.f32.mrf.mxu0
    %v742 = vadd.f32 0.0, %v741
    %v743 = vpop.f32.mrf.mxu0
    %744 = vmatprep.mubr.bf16.mxu0 %v369
    %745 = vmatmul.mubr.bf16.gmra.mxu0 %v368
    %v746 = vpop.f32.mrf.mxu0
    %v747 = vadd.f32 0.0, %v746
    %v748 = vpop.f32.mrf.mxu0
    %v749 = vpop.f32.mrf.mxu0
    %v750 = vadd.f32 0.0, %v749
    %v751 = vpop.f32.mrf.mxu0
    %752 = vmatprep.mubr.bf16.mxu0 %v371
    %753 = vmatmul.mubr.bf16.gmra.mxu0 %v370
    %v754 = vpop.f32.mrf.mxu0
    %v755 = vadd.f32 0.0, %v754
    %v756 = vpop.f32.mrf.mxu0
    %v757 = vpop.f32.mrf.mxu0
    %v758 = vadd.f32 0.0, %v757
    %v759 = vpop.f32.mrf.mxu0
    %760 = vmatprep.mubr.bf16.mxu0 %v373
    %761 = vmatmul.mubr.bf16.gmra.mxu0 %v372
    %v762 = vpop.f32.mrf.mxu0
    %v763 = vadd.f32 0.0, %v762
    %v764 = vpop.f32.mrf.mxu0
    %v765 = vpop.f32.mrf.mxu0
    %v766 = vadd.f32 0.0, %v765
    %v767 = vpop.f32.mrf.mxu0
    %768 = vmatprep.mubr.bf16.mxu0 %v375
    %769 = vmatmul.mubr.bf16.gmra.mxu0 %v374
    %v770 = vpop.f32.mrf.mxu0
    %v771 = vadd.f32 0.0, %v770
    %v772 = vpop.f32.mrf.mxu0
    %v773 = vpop.f32.mrf.mxu0
    %v774 = vadd.f32 0.0, %v773
    %v775 = vpop.f32.mrf.mxu0
    %776 = vmatprep.mubr.bf16.mxu0 %v377
    %777 = vmatmul.mubr.bf16.gmra.mxu0 %v376
    %v778 = vpop.f32.mrf.mxu0
    %v779 = vadd.f32 0.0, %v778
    %v780 = vpop.f32.mrf.mxu0
    %v781 = vpop.f32.mrf.mxu0
    %v782 = vadd.f32 0.0, %v781
    %v783 = vpop.f32.mrf.mxu0
    %784 = vmatprep.mubr.bf16.mxu0 %v379
    %785 = vmatmul.mubr.bf16.gmra.mxu0 %v378
    %v786 = vpop.f32.mrf.mxu0
    %v787 = vadd.f32 0.0, %v786
    %v788 = vpop.f32.mrf.mxu0
    %v789 = vpop.f32.mrf.mxu0
    %v790 = vadd.f32 0.0, %v789
    %v791 = vpop.f32.mrf.mxu0
    %792 = vmatprep.mubr.bf16.mxu0 %v381
    %793 = vmatmul.mubr.bf16.gmra.mxu0 %v380
    %v794 = vpop.f32.mrf.mxu0
    %v795 = vadd.f32 0.0, %v794
    %v796 = vpop.f32.mrf.mxu0
    %v797 = vpop.f32.mrf.mxu0
    %v798 = vadd.f32 0.0, %v797
    %v799 = vpop.f32.mrf.mxu0
    %800 = vmatprep.mubr.bf16.mxu0 %v383
    %801 = vmatmul.mubr.bf16.gmra.mxu0 %v382
    %v802 = vpop.f32.mrf.mxu0
    %v803 = vadd.f32 0.0, %v802
    %v804 = vpop.f32.mrf.mxu0
    %v805 = vpop.f32.mrf.mxu0
    %v806 = vadd.f32 0.0, %v805
    %v807 = vpop.f32.mrf.mxu0
    %808 = vmatprep.mubr.bf16.mxu0 %v385
    %809 = vmatmul.mubr.bf16.gmra.mxu0 %v384
    %v810 = vpop.f32.mrf.mxu0
    %v811 = vadd.f32 0.0, %v810
    %v812 = vpop.f32.mrf.mxu0
    %v813 = vpop.f32.mrf.mxu0
    %v814 = vadd.f32 0.0, %v813
    %v815 = vpop.f32.mrf.mxu0
    %816 = vmatprep.mubr.bf16.mxu0 %v387
    %817 = vmatmul.mubr.bf16.gmra.mxu0 %v386
    %v818 = vpop.f32.mrf.mxu0
    %v819 = vadd.f32 0.0, %v818
    %v820 = vpop.f32.mrf.mxu0
    %v821 = vpop.f32.mrf.mxu0
    %v822 = vadd.f32 0.0, %v821
    %v823 = vpop.f32.mrf.mxu0
    %824 = vmatprep.mubr.bf16.mxu0 %v389
    %825 = vmatmul.mubr.bf16.gmra.mxu0 %v388
    %v826 = vpop.f32.mrf.mxu0
    %v827 = vadd.f32 0.0, %v826
    %v828 = vpop.f32.mrf.mxu0
    %v829 = vpop.f32.mrf.mxu0
    %v830 = vadd.f32 0.0, %v829
    %v831 = vpop.f32.mrf.mxu0
    %832 = vmatprep.mubr.bf16.mxu0 %v391
    %833 = vmatmul.mubr.bf16.gmra.mxu0 %v390
    %v834 = vpop.f32.mrf.mxu0
    %v835 = vadd.f32 0.0, %v834
    %v836 = vpop.f32.mrf.mxu0
    %v837 = vpop.f32.mrf.mxu0
    %v838 = vadd.f32 0.0, %v837
    %v839 = vpop.f32.mrf.mxu0
    %840 = vdwg.mxu0
    %v841 = vmax.f32 %v587, 0.0
    %v842 = vmax.f32 %v590, 0.0
    %v843 = vmax.f32 %v595, 0.0
    %v844 = vmax.f32 %v598, 0.0
    %v845 = vmax.f32 %v603, 0.0
    %v846 = vmax.f32 %v606, 0.0
    %v847 = vmax.f32 %v611, 0.0
    %v848 = vmax.f32 %v614, 0.0
    %v849 = vmax.f32 %v619, 0.0
    %v850 = vmax.f32 %v622, 0.0
    %v851 = vmax.f32 %v627, 0.0
    %v852 = vmax.f32 %v630, 0.0
    %v853 = vmax.f32 %v635, 0.0
    %v854 = vmax.f32 %v638, 0.0
    %v855 = vmax.f32 %v643, 0.0
    %v856 = vmax.f32 %v646, 0.0
    %v857 = vmax.f32 %v651, 0.0
    %v858 = vmax.f32 %v654, 0.0
    %v859 = vmax.f32 %v659, 0.0
    %v860 = vmax.f32 %v662, 0.0
    %v861 = vmax.f32 %v667, 0.0
    %v862 = vmax.f32 %v670, 0.0
    %v863 = vmax.f32 %v675, 0.0
    %v864 = vmax.f32 %v678, 0.0
    %v865 = vmax.f32 %v683, 0.0
    %v866 = vmax.f32 %v686, 0.0
    %v867 = vmax.f32 %v691, 0.0
    %v868 = vmax.f32 %v694, 0.0
    %v869 = vmax.f32 %v699, 0.0
    %v870 = vmax.f32 %v702, 0.0
    %v871 = vmax.f32 %v707, 0.0
    %v872 = vmax.f32 %v710, 0.0
    %v873 = vmax.f32 %v715, 0.0
    %v874 = vmax.f32 %v718, 0.0
    %v875 = vmax.f32 %v723, 0.0
    %v876 = vmax.f32 %v726, 0.0
    %v877 = vmax.f32 %v731, 0.0
    %v878 = vmax.f32 %v734, 0.0
    %v879 = vmax.f32 %v739, 0.0
    %v880 = vmax.f32 %v742, 0.0
    %v881 = vmax.f32 %v747, 0.0
    %v882 = vmax.f32 %v750, 0.0
    %v883 = vmax.f32 %v755, 0.0
    %v884 = vmax.f32 %v758, 0.0
    %v885 = vmax.f32 %v763, 0.0
    %v886 = vmax.f32 %v766, 0.0
    %v887 = vmax.f32 %v771, 0.0
    %v888 = vmax.f32 %v774, 0.0
    %v889 = vmax.f32 %v779, 0.0
    %v890 = vmax.f32 %v782, 0.0
    %v891 = vmax.f32 %v787, 0.0
    %v892 = vmax.f32 %v790, 0.0
    %v893 = vmax.f32 %v795, 0.0
    %v894 = vmax.f32 %v798, 0.0
    %v895 = vmax.f32 %v803, 0.0
    %v896 = vmax.f32 %v806, 0.0
    %v897 = vmax.f32 %v811, 0.0
    %v898 = vmax.f32 %v814, 0.0
    %v899 = vmax.f32 %v819, 0.0
    %v900 = vmax.f32 %v822, 0.0
    %v901 = vmax.f32 %v827, 0.0
    %v902 = vmax.f32 %v830, 0.0
    %v903 = vmax.f32 %v835, 0.0
    %v904 = vmax.f32 %v838, 0.0
    %v905 = vadd.f32 %v841, %v842
    %v906 = vadd.f32 %v905, %v843
    %v907 = vadd.f32 %v906, %v844
    %v908 = vadd.f32 %v907, %v845
    %v909 = vadd.f32 %v908, %v846
    %v910 = vadd.f32 %v909, %v847
    %v911 = vadd.f32 %v910, %v848
    %v912 = vrot.slane %v911, 4
    %v913 = vadd.f32 %v911, %v912
    %v914 = vrot.slane %v913, 2
    %v915 = vadd.f32 %v913, %v914
    %v916 = vrot.slane %v915, 1
    %v917 = vadd.f32 %v915, %v916
    %v918 = vadd.f32 %v849, %v850
    %v919 = vadd.f32 %v918, %v851
    %v920 = vadd.f32 %v919, %v852
    %v921 = vadd.f32 %v920, %v853
    %v922 = vadd.f32 %v921, %v854
    %v923 = vadd.f32 %v922, %v855
    %v924 = vadd.f32 %v923, %v856
    %v925 = vrot.slane %v924, 4
    %v926 = vadd.f32 %v924, %v925
    %v927 = vrot.slane %v926, 2
    %v928 = vadd.f32 %v926, %v927
    %v929 = vrot.slane %v928, 1
    %v930 = vadd.f32 %v928, %v929
    %v931 = vadd.f32 %v857, %v858
    %v932 = vadd.f32 %v931, %v859
    %v933 = vadd.f32 %v932, %v860
    %v934 = vadd.f32 %v933, %v861
    %v935 = vadd.f32 %v934, %v862
    %v936 = vadd.f32 %v935, %v863
    %v937 = vadd.f32 %v936, %v864
    %v938 = vrot.slane %v937, 4
    %v939 = vadd.f32 %v937, %v938
    %v940 = vrot.slane %v939, 2
    %v941 = vadd.f32 %v939, %v940
    %v942 = vrot.slane %v941, 1
    %v943 = vadd.f32 %v941, %v942
    %v944 = vadd.f32 %v865, %v866
    %v945 = vadd.f32 %v944, %v867
    %v946 = vadd.f32 %v945, %v868
    %v947 = vadd.f32 %v946, %v869
    %v948 = vadd.f32 %v947, %v870
    %v949 = vadd.f32 %v948, %v871
    %v950 = vadd.f32 %v949, %v872
    %v951 = vrot.slane %v950, 4
    %v952 = vadd.f32 %v950, %v951
    %v953 = vrot.slane %v952, 2
    %v954 = vadd.f32 %v952, %v953
    %v955 = vrot.slane %v954, 1
    %v956 = vadd.f32 %v954, %v955
    %v957 = vadd.f32 %v873, %v874
    %v958 = vadd.f32 %v957, %v875
    %v959 = vadd.f32 %v958, %v876
    %v960 = vadd.f32 %v959, %v877
    %v961 = vadd.f32 %v960, %v878
    %v962 = vadd.f32 %v961, %v879
    %v963 = vadd.f32 %v962, %v880
    %v964 = vrot.slane %v963, 4
    %v965 = vadd.f32 %v963, %v964
    %v966 = vrot.slane %v965, 2
    %v967 = vadd.f32 %v965, %v966
    %v968 = vrot.slane %v967, 1
    %v969 = vadd.f32 %v967, %v968
    %v970 = vadd.f32 %v881, %v882
    %v971 = vadd.f32 %v970, %v883
    %v972 = vadd.f32 %v971, %v884
    %v973 = vadd.f32 %v972, %v885
    %v974 = vadd.f32 %v973, %v886
    %v975 = vadd.f32 %v974, %v887
    %v976 = vadd.f32 %v975, %v888
    %v977 = vrot.slane %v976, 4
    %v978 = vadd.f32 %v976, %v977
    %v979 = vrot.slane %v978, 2
    %v980 = vadd.f32 %v978, %v979
    %v981 = vrot.slane %v980, 1
    %v982 = vadd.f32 %v980, %v981
    %v983 = vadd.f32 %v889, %v890
    %v984 = vadd.f32 %v983, %v891
    %v985 = vadd.f32 %v984, %v892
    %v986 = vadd.f32 %v985, %v893
    %v987 = vadd.f32 %v986, %v894
    %v988 = vadd.f32 %v987, %v895
    %v989 = vadd.f32 %v988, %v896
    %v990 = vrot.slane %v989, 4
    %v991 = vadd.f32 %v989, %v990
    %v992 = vrot.slane %v991, 2
    %v993 = vadd.f32 %v991, %v992
    %v994 = vrot.slane %v993, 1
    %v995 = vadd.f32 %v993, %v994
    %v996 = vadd.f32 %v897, %v898
    %v997 = vadd.f32 %v996, %v899
    %v998 = vadd.f32 %v997, %v900
    %v999 = vadd.f32 %v998, %v901
    %v1000 = vadd.f32 %v999, %v902
    %v1001 = vadd.f32 %v1000, %v903
    %v1002 = vadd.f32 %v1001, %v904
    %v1003 = vrot.slane %v1002, 4
    %v1004 = vadd.f32 %v1002, %v1003
    %v1005 = vrot.slane %v1004, 2
    %v1006 = vadd.f32 %v1004, %v1005
    %v1007 = vrot.slane %v1006, 1
    %v1008 = vadd.f32 %v1006, %v1007
    %vm1017 = vcmask 1041409
    %v1018 = vsel %vm1017, %v930, %v917
    %vm1019 = vcmask 1042434
    %v1020 = vsel %vm1019, %v943, %v1018
    %vm1021 = vcmask 1043459
    %v1022 = vsel %vm1021, %v956, %v1020
    %vm1023 = vcmask 1044484
    %v1024 = vsel %vm1023, %v969, %v1022
    %vm1025 = vcmask 1045509
    %v1026 = vsel %vm1025, %v982, %v1024
    %vm1027 = vcmask 1046534
    %v1028 = vsel %vm1027, %v995, %v1026
    %vm1029 = vcmask 1047559
    %v1030 = vsel %vm1029, %v1008, %v1028
    %s1032 = smul.u32 0, 8
    %s1033 = scalar_lea.vmem [#allocation2], %s1032
    %1034 = vst [vmem:[%s1033] sm:$0xff] %v1030
    %p1035 = scmp.eq.s32.totalorder 0, 0
    // Predicated region
    $region46: #{_lambda_.1} parent=1 // pred_check
      %p1036 = pneg %p1035
    $region47: #{_lambda_.1} parent=1 // pred_check_branch
      %1038 = sbr.rel (%p1036) target = $region49
    $region48: #{_lambda_.1} parent=1 // pred_region
      %v1039 = vld [vmem:[#allocation2] sm:$0xff]
      %v1040 = vmul.f32 %v1039, 0.015625
      %v1041 = vld [vmem:[%s3] sm:$0xf]
      %v1042 = vld [vmem:[%s3 + $0x4] sm:$0xf]
      %v1043 = vld [vmem:[%s3 + $0x8] sm:$0xf]
      %v1044 = vld [vmem:[%s3 + $0xc] sm:$0xf]
      %v1045 = vld [vmem:[%s3 + $0x10] sm:$0xf]
      %v1046 = vld [vmem:[%s3 + $0x14] sm:$0xf]
      %v1047 = vld [vmem:[%s3 + $0x18] sm:$0xf]
      %v1048 = vld [vmem:[%s3 + $0x1c] sm:$0xf]
      %v1049 = vld [vmem:[%s3 + $0x20] sm:$0xf]
      %v1050 = vld [vmem:[%s3 + $0x24] sm:$0xf]
      %v1051 = vld [vmem:[%s3 + $0x28] sm:$0xf]
      %v1052 = vld [vmem:[%s3 + $0x2c] sm:$0xf]
      %v1053 = vld [vmem:[%s3 + $0x30] sm:$0xf]
      %v1054 = vld [vmem:[%s3 + $0x34] sm:$0xf]
      %v1055 = vld [vmem:[%s3 + $0x38] sm:$0xf]
      %v1056 = vld [vmem:[%s3 + $0x3c] sm:$0xf]
      %v1057 = vpack.c.bf16 %v1040, %v1040
      %v1058 = vld [vmem:[%s9] sm:$0x1]
      %v1059 = vlaneseq
      %v1060 = vshrl.u32 %v1059, 7
      %v1061 = vsub.s32 0, %v1060
      %v1062 = vrot.slane %v1058, %v1061
      %v1079 = vunpack.c.l.b16 %v1041
      %v1080 = vunpack.c.l.b16 %v1042
      %v1081 = vunpack.c.l.b16 %v1043
      %v1082 = vunpack.c.l.b16 %v1044
      %v1083 = vunpack.c.l.b16 %v1045
      %v1084 = vunpack.c.l.b16 %v1046
      %v1085 = vunpack.c.l.b16 %v1047
      %v1086 = vunpack.c.l.b16 %v1048
      %v1087 = vunpack.c.l.b16 %v1049
      %v1088 = vunpack.c.l.b16 %v1050
      %v1089 = vunpack.c.l.b16 %v1051
      %v1090 = vunpack.c.l.b16 %v1052
      %v1091 = vunpack.c.l.b16 %v1053
      %v1092 = vunpack.c.l.b16 %v1054
      %v1093 = vunpack.c.l.b16 %v1055
      %v1094 = vunpack.c.l.b16 %v1056
      %v1095 = vpack.c.b16 %v1080, %v1079
      %v1096 = vpack.c.b16 %v1082, %v1081
      %v1097 = vpack.c.b16 %v1084, %v1083
      %v1098 = vpack.c.b16 %v1086, %v1085
      %v1099 = vpack.c.b16 %v1088, %v1087
      %v1100 = vpack.c.b16 %v1090, %v1089
      %v1101 = vpack.c.b16 %v1092, %v1091
      %v1102 = vpack.c.b16 %v1094, %v1093
      %1111 = vmatprep.subr.bf16.mxu0 0
      %1112 = vmatpush1.bf16.msra.mxu0 %v1102
      %1113 = vmatprep.subr.bf16.mxu0 0
      %1114 = vmatpush1.bf16.msra.mxu0 %v1101
      %1115 = vmatprep.subr.bf16.mxu0 0
      %1116 = vmatpush1.bf16.msra.mxu0 %v1100
      %1117 = vmatprep.subr.bf16.mxu0 0
      %1118 = vmatpush1.bf16.msra.mxu0 %v1099
      %1119 = vmatprep.subr.bf16.mxu0 0
      %1120 = vmatpush1.bf16.msra.mxu0 %v1098
      %1121 = vmatprep.subr.bf16.mxu0 0
      %1122 = vmatpush1.bf16.msra.mxu0 %v1097
      %1123 = vmatprep.subr.bf16.mxu0 0
      %1124 = vmatpush1.bf16.msra.mxu0 %v1096
      %1125 = vmatprep.subr.bf16.mxu0 0
      %1126 = vmatpush1.bf16.msra.mxu0 %v1095
      %1127 = vmatprep.subr.bf16.mxu0 0
      %1128 = vmatpush2.bf16.msra.mxu0 0
      %1129 = vmatprep.subr.bf16.mxu0 0
      %1130 = vmatpush2.bf16.msra.mxu0 0
      %1131 = vmatprep.subr.bf16.mxu0 0
      %1132 = vmatpush2.bf16.msra.mxu0 0
      %1133 = vmatprep.subr.bf16.mxu0 0
      %1134 = vmatpush2.bf16.msra.mxu0 0
      %1135 = vmatprep.subr.bf16.mxu0 0
      %1136 = vmatpush2.bf16.msra.mxu0 0
      %1137 = vmatprep.subr.bf16.mxu0 0
      %1138 = vmatpush2.bf16.msra.mxu0 0
      %1139 = vmatprep.subr.bf16.mxu0 0
      %1140 = vmatpush2.bf16.msra.mxu0 0
      %1141 = vmatprep.subr.bf16.mxu0 0
      %1142 = vmatpush2.bf16.msra.mxu0 0
      %1143 = vmatprep.mubr.bf16.mxu0 0
      %1144 = vmatmul.mubr.bf16.gmra.mxu0 %v1057
      %v1145 = vpop.f32.mrf.mxu0
      %v1146 = vadd.f32 %v1062, %v1145
      %v1147 = vpop.f32.mrf.mxu0
      %v1148 = vpop.f32.mrf.mxu0
      %v1149 = vpop.f32.mrf.mxu0
      %1150 = vdwg.mxu0
      %v1151 = vld [vmem:[%s9 + $0x1] sm:$0x1]
      %v1152 = vld [vmem:[%s9 + $0x2] sm:$0x1]
      %v1153 = vrot.slane %v1146, 4
      %v1154 = vadd.f32 %v1146, %v1153
      %v1155 = vrot.slane %v1154, 2
      %v1156 = vadd.f32 %v1154, %v1155
      %v1157 = vrot.slane %v1156, 1
      %v1158 = vadd.f32 %v1156, %v1157
      %v1159 = vrcp.pop 8.0
      %v1160 = vmul.f32 %v1158, %v1159
      %v1161 = vsub.f32 %v1146, %v1160
      %v1162 = vmul.f32 %v1161, %v1161
      %v1163 = vrot.slane %v1162, 4
      %v1164 = vadd.f32 %v1162, %v1163
      %v1165 = vrot.slane %v1164, 2
      %v1166 = vadd.f32 %v1164, %v1165
      %v1167 = vrot.slane %v1166, 1
      %v1168 = vadd.f32 %v1166, %v1167
      %v1169 = vmul.f32 %v1168, %v1159
      %v1170 = vadd.f32 %v1169, 1e-05
      %v1171 = vrsqrt.pop %v1170
      %v1172 = vmul.f32 %v1161, %v1171
      %v1173 = vlaneseq
      %v1174 = vshrl.u32 %v1173, 7
      %v1175 = vsub.s32 0, %v1174
      %v1176 = vrot.slane %v1151, %v1175
      %v1177 = vmul.f32 %v1172, %v1176
      %v1178 = vlaneseq
      %v1179 = vshrl.u32 %v1178, 7
      %v1180 = vsub.s32 0, %v1179
      %v1181 = vrot.slane %v1152, %v1180
      %v1182 = vadd.f32 %v1177, %v1181
      %v1183 = vld [vmem:[%s10] sm:$0xff]
      %v1184 = vld [vmem:[%s2] sm:$0xff]
      %v1185 = vld [vmem:[%s4] sm:$0xf]
      %v1186 = vld [vmem:[%s4 + $0x4] sm:$0xf]
      %v1187 = vpack.c.bf16 %v1184, %v1184
      %v1188 = vld [vmem:[%s9 + $0x3] sm:$0x1]
      %v1189 = vlaneseq
      %v1190 = vshrl.u32 %v1189, 7
      %v1191 = vsub.s32 0, %v1190
      %v1192 = vrot.slane %v1188, %v1191
      %v1195 = vunpack.c.l.b16 %v1185
      %v1196 = vunpack.c.l.b16 %v1186
      %v1197 = vpack.c.b16 %v1196, %v1195
      %vm1199 = vcmask 130048
      %v1201 = vsel %vm1199, %v1187, 0
      %1203 = vmatprep.subr.bf16.mxu0 0
      %1204 = vmatpush1.bf16.msra.mxu0 0
      %1205 = vmatprep.subr.bf16.mxu0 0
      %1206 = vmatpush1.bf16.msra.mxu0 0
      %1207 = vmatprep.subr.bf16.mxu0 0
      %1208 = vmatpush1.bf16.msra.mxu0 0
      %1209 = vmatprep.subr.bf16.mxu0 0
      %1210 = vmatpush1.bf16.msra.mxu0 0
      %1211 = vmatprep.subr.bf16.mxu0 0
      %1212 = vmatpush1.bf16.msra.mxu0 0
      %1213 = vmatprep.subr.bf16.mxu0 0
      %1214 = vmatpush1.bf16.msra.mxu0 0
      %1215 = vmatprep.subr.bf16.mxu0 0
      %1216 = vmatpush1.bf16.msra.mxu0 0
      %1217 = vmatprep.subr.bf16.mxu0 0
      %1218 = vmatpush1.bf16.msra.mxu0 %v1197
      %1219 = vmatprep.subr.bf16.mxu0 0
      %1220 = vmatpush2.bf16.msra.mxu0 0
      %1221 = vmatprep.subr.bf16.mxu0 0
      %1222 = vmatpush2.bf16.msra.mxu0 0
      %1223 = vmatprep.subr.bf16.mxu0 0
      %1224 = vmatpush2.bf16.msra.mxu0 0
      %1225 = vmatprep.subr.bf16.mxu0 0
      %1226 = vmatpush2.bf16.msra.mxu0 0
      %1227 = vmatprep.subr.bf16.mxu0 0
      %1228 = vmatpush2.bf16.msra.mxu0 0
      %1229 = vmatprep.subr.bf16.mxu0 0
      %1230 = vmatpush2.bf16.msra.mxu0 0
      %1231 = vmatprep.subr.bf16.mxu0 0
      %1232 = vmatpush2.bf16.msra.mxu0 0
      %1233 = vmatprep.subr.bf16.mxu0 0
      %1234 = vmatpush2.bf16.msra.mxu0 0
      %1235 = vmatprep.mubr.bf16.mxu0 0
      %1236 = vmatmul.mubr.bf16.gmra.mxu0 %v1201
      %v1237 = vpop.f32.mrf.mxu0
      %v1238 = vadd.f32 %v1192, %v1237
      %v1239 = vpop.f32.mrf.mxu0
      %v1240 = vpop.f32.mrf.mxu0
      %v1241 = vpop.f32.mrf.mxu0
      %1242 = vdwg.mxu0
      %v1243 = vmul.f32 %v1183, %v1238
      %v1244 = vld [vmem:[%s9 + $0x4] sm:$0x1]
      %v1245 = vld [vmem:[%s9 + $0x5] sm:$0x1]
      %v1246 = vrot.slane %v1243, 4
      %v1247 = vadd.f32 %v1243, %v1246
      %v1248 = vrot.slane %v1247, 2
      %v1249 = vadd.f32 %v1247, %v1248
      %v1250 = vrot.slane %v1249, 1
      %v1251 = vadd.f32 %v1249, %v1250
      %v1252 = vmul.f32 %v1251, %v1159
      %v1253 = vsub.f32 %v1243, %v1252
      %v1254 = vmul.f32 %v1253, %v1253
      %v1255 = vrot.slane %v1254, 4
      %v1256 = vadd.f32 %v1254, %v1255
      %v1257 = vrot.slane %v1256, 2
      %v1258 = vadd.f32 %v1256, %v1257
      %v1259 = vrot.slane %v1258, 1
      %v1260 = vadd.f32 %v1258, %v1259
      %v1261 = vmul.f32 %v1260, %v1159
      %v1262 = vadd.f32 %v1261, 1e-05
      %v1263 = vrsqrt.pop %v1262
      %v1264 = vmul.f32 %v1253, %v1263
      %v1265 = vlaneseq
      %v1266 = vshrl.u32 %v1265, 7
      %v1267 = vsub.s32 0, %v1266
      %v1268 = vrot.slane %v1244, %v1267
      %v1269 = vmul.f32 %v1264, %v1268
      %v1270 = vlaneseq
      %v1271 = vshrl.u32 %v1270, 7
      %v1272 = vsub.s32 0, %v1271
      %v1273 = vrot.slane %v1245, %v1272
      %v1274 = vadd.f32 %v1269, %v1273
      %v1275 = vmax.f32 %v1274, 0.0
      %v1276 = vand.u32 2147483647, %v1274
      %v1277 = vsub.f32 0.0, %v1276
      %v1278 = vmul.f32 %v1277, 1.442695
      %v1279 = vpow.pop %v1278
      %v1280 = vadd.f32 %v1279, 1.0
      %v1281 = vlog2.pop %v1280
      %v1282 = vmul.f32 %v1281, 0.6931472
      %v1283 = vmul.f32 -0.5, %v1279
      %v1284 = vadd.f32 %v1283, 1.0
      %v1285 = vmul.f32 %v1284, %v1279
      %v1286 = vand.u32 2147483647, %v1279
      %vm1287 = vcmp.lt.f32.partialorder %v1286, 0.0004427343
      %v1288 = vsel %vm1287, %v1285, %v1282
      %v1289 = vadd.f32 %v1275, %v1288
      %v1290 = vmul.f32 %v1182, %v1289
      %s1291 = scalar_lea.vmem %s10, 8
      %v1292 = vld [vmem:[%s1291] sm:$0xff]
      %v1293 = vld [vmem:[%s5] sm:$0xf]
      %v1294 = vld [vmem:[%s5 + $0x4] sm:$0xf]
      %v1295 = vld [vmem:[%s5 + $0x8] sm:$0xf]
      %v1296 = vld [vmem:[%s5 + $0xc] sm:$0xf]
      %v1297 = vld [vmem:[%s5 + $0x10] sm:$0xf]
      %v1298 = vld [vmem:[%s5 + $0x14] sm:$0xf]
      %v1299 = vld [vmem:[%s5 + $0x18] sm:$0xf]
      %v1300 = vld [vmem:[%s5 + $0x1c] sm:$0xf]
      %v1301 = vld [vmem:[%s5 + $0x20] sm:$0xf]
      %v1302 = vld [vmem:[%s5 + $0x24] sm:$0xf]
      %v1303 = vld [vmem:[%s5 + $0x28] sm:$0xf]
      %v1304 = vld [vmem:[%s5 + $0x2c] sm:$0xf]
      %v1305 = vld [vmem:[%s5 + $0x30] sm:$0xf]
      %v1306 = vld [vmem:[%s5 + $0x34] sm:$0xf]
      %v1307 = vld [vmem:[%s5 + $0x38] sm:$0xf]
      %v1308 = vld [vmem:[%s5 + $0x3c] sm:$0xf]
      %v1309 = vpack.c.bf16 %v1290, %v1290
      %v1310 = vld [vmem:[%s9 + $0x6] sm:$0x1]
      %v1311 = vlaneseq
      %v1312 = vshrl.u32 %v1311, 7
      %v1313 = vsub.s32 0, %v1312
      %v1314 = vrot.slane %v1310, %v1313
      %v1331 = vunpack.c.l.b16 %v1293
      %v1332 = vunpack.c.l.b16 %v1294
      %v1333 = vunpack.c.l.b16 %v1295
      %v1334 = vunpack.c.l.b16 %v1296
      %v1335 = vunpack.c.l.b16 %v1297
      %v1336 = vunpack.c.l.b16 %v1298
      %v1337 = vunpack.c.l.b16 %v1299
      %v1338 = vunpack.c.l.b16 %v1300
      %v1339 = vunpack.c.l.b16 %v1301
      %v1340 = vunpack.c.l.b16 %v1302
      %v1341 = vunpack.c.l.b16 %v1303
      %v1342 = vunpack.c.l.b16 %v1304
      %v1343 = vunpack.c.l.b16 %v1305
      %v1344 = vunpack.c.l.b16 %v1306
      %v1345 = vunpack.c.l.b16 %v1307
      %v1346 = vunpack.c.l.b16 %v1308
      %v1347 = vpack.c.b16 %v1332, %v1331
      %v1348 = vpack.c.b16 %v1334, %v1333
      %v1349 = vpack.c.b16 %v1336, %v1335
      %v1350 = vpack.c.b16 %v1338, %v1337
      %v1351 = vpack.c.b16 %v1340, %v1339
      %v1352 = vpack.c.b16 %v1342, %v1341
      %v1353 = vpack.c.b16 %v1344, %v1343
      %v1354 = vpack.c.b16 %v1346, %v1345
      %1363 = vmatprep.subr.bf16.mxu0 0
      %1364 = vmatpush1.bf16.msra.mxu0 %v1354
      %1365 = vmatprep.subr.bf16.mxu0 0
      %1366 = vmatpush1.bf16.msra.mxu0 %v1353
      %1367 = vmatprep.subr.bf16.mxu0 0
      %1368 = vmatpush1.bf16.msra.mxu0 %v1352
      %1369 = vmatprep.subr.bf16.mxu0 0
      %1370 = vmatpush1.bf16.msra.mxu0 %v1351
      %1371 = vmatprep.subr.bf16.mxu0 0
      %1372 = vmatpush1.bf16.msra.mxu0 %v1350
      %1373 = vmatprep.subr.bf16.mxu0 0
      %1374 = vmatpush1.bf16.msra.mxu0 %v1349
      %1375 = vmatprep.subr.bf16.mxu0 0
      %1376 = vmatpush1.bf16.msra.mxu0 %v1348
      %1377 = vmatprep.subr.bf16.mxu0 0
      %1378 = vmatpush1.bf16.msra.mxu0 %v1347
      %1379 = vmatprep.subr.bf16.mxu0 0
      %1380 = vmatpush2.bf16.msra.mxu0 0
      %1381 = vmatprep.subr.bf16.mxu0 0
      %1382 = vmatpush2.bf16.msra.mxu0 0
      %1383 = vmatprep.subr.bf16.mxu0 0
      %1384 = vmatpush2.bf16.msra.mxu0 0
      %1385 = vmatprep.subr.bf16.mxu0 0
      %1386 = vmatpush2.bf16.msra.mxu0 0
      %1387 = vmatprep.subr.bf16.mxu0 0
      %1388 = vmatpush2.bf16.msra.mxu0 0
      %1389 = vmatprep.subr.bf16.mxu0 0
      %1390 = vmatpush2.bf16.msra.mxu0 0
      %1391 = vmatprep.subr.bf16.mxu0 0
      %1392 = vmatpush2.bf16.msra.mxu0 0
      %1393 = vmatprep.subr.bf16.mxu0 0
      %1394 = vmatpush2.bf16.msra.mxu0 0
      %1395 = vmatprep.mubr.bf16.mxu0 0
      %1396 = vmatmul.mubr.bf16.gmra.mxu0 %v1309
      %v1397 = vpop.f32.mrf.mxu0
      %v1398 = vadd.f32 %v1314, %v1397
      %v1399 = vpop.f32.mrf.mxu0
      %v1400 = vpop.f32.mrf.mxu0
      %v1401 = vpop.f32.mrf.mxu0
      %1402 = vdwg.mxu0
      %v1403 = vmul.f32 %v1292, %v1398
      %v1404 = vld [vmem:[%s9 + $0x7] sm:$0x1]
      %v1405 = vld [vmem:[%s9 + $0x8] sm:$0x1]
      %v1406 = vrot.slane %v1403, 4
      %v1407 = vadd.f32 %v1403, %v1406
      %v1408 = vrot.slane %v1407, 2
      %v1409 = vadd.f32 %v1407, %v1408
      %v1410 = vrot.slane %v1409, 1
      %v1411 = vadd.f32 %v1409, %v1410
      %v1412 = vmul.f32 %v1411, %v1159
      %v1413 = vsub.f32 %v1403, %v1412
      %v1414 = vmul.f32 %v1413, %v1413
      %v1415 = vrot.slane %v1414, 4
      %v1416 = vadd.f32 %v1414, %v1415
      %v1417 = vrot.slane %v1416, 2
      %v1418 = vadd.f32 %v1416, %v1417
      %v1419 = vrot.slane %v1418, 1
      %v1420 = vadd.f32 %v1418, %v1419
      %v1421 = vmul.f32 %v1420, %v1159
      %v1422 = vadd.f32 %v1421, 1e-05
      %v1423 = vrsqrt.pop %v1422
      %v1424 = vmul.f32 %v1413, %v1423
      %v1425 = vlaneseq
      %v1426 = vshrl.u32 %v1425, 7
      %v1427 = vsub.s32 0, %v1426
      %v1428 = vrot.slane %v1404, %v1427
      %v1429 = vmul.f32 %v1424, %v1428
      %v1430 = vlaneseq
      %v1431 = vshrl.u32 %v1430, 7
      %v1432 = vsub.s32 0, %v1431
      %v1433 = vrot.slane %v1405, %v1432
      %v1434 = vadd.f32 %v1429, %v1433
      %v1435 = vld [vmem:[%s6] sm:$0xf]
      %v1436 = vld [vmem:[%s6 + $0x4] sm:$0xf]
      %v1437 = vld [vmem:[%s6 + $0x8] sm:$0xf]
      %v1438 = vld [vmem:[%s6 + $0xc] sm:$0xf]
      %v1439 = vld [vmem:[%s6 + $0x10] sm:$0xf]
      %v1440 = vld [vmem:[%s6 + $0x14] sm:$0xf]
      %v1441 = vld [vmem:[%s6 + $0x18] sm:$0xf]
      %v1442 = vld [vmem:[%s6 + $0x1c] sm:$0xf]
      %v1443 = vld [vmem:[%s6 + $0x20] sm:$0xf]
      %v1444 = vld [vmem:[%s6 + $0x24] sm:$0xf]
      %v1445 = vld [vmem:[%s6 + $0x28] sm:$0xf]
      %v1446 = vld [vmem:[%s6 + $0x2c] sm:$0xf]
      %v1447 = vld [vmem:[%s6 + $0x30] sm:$0xf]
      %v1448 = vld [vmem:[%s6 + $0x34] sm:$0xf]
      %v1449 = vld [vmem:[%s6 + $0x38] sm:$0xf]
      %v1450 = vld [vmem:[%s6 + $0x3c] sm:$0xf]
      %v1451 = vpack.c.bf16 %v1434, %v1434
      %v1468 = vunpack.c.l.b16 %v1435
      %v1469 = vunpack.c.l.b16 %v1436
      %v1470 = vunpack.c.l.b16 %v1437
      %v1471 = vunpack.c.l.b16 %v1438
      %v1472 = vunpack.c.l.b16 %v1439
      %v1473 = vunpack.c.l.b16 %v1440
      %v1474 = vunpack.c.l.b16 %v1441
      %v1475 = vunpack.c.l.b16 %v1442
      %v1476 = vunpack.c.l.b16 %v1443
      %v1477 = vunpack.c.l.b16 %v1444
      %v1478 = vunpack.c.l.b16 %v1445
      %v1479 = vunpack.c.l.b16 %v1446
      %v1480 = vunpack.c.l.b16 %v1447
      %v1481 = vunpack.c.l.b16 %v1448
      %v1482 = vunpack.c.l.b16 %v1449
      %v1483 = vunpack.c.l.b16 %v1450
      %v1484 = vpack.c.b16 %v1469, %v1468
      %v1485 = vpack.c.b16 %v1471, %v1470
      %v1486 = vpack.c.b16 %v1473, %v1472
      %v1487 = vpack.c.b16 %v1475, %v1474
      %v1488 = vpack.c.b16 %v1477, %v1476
      %v1489 = vpack.c.b16 %v1479, %v1478
      %v1490 = vpack.c.b16 %v1481, %v1480
      %v1491 = vpack.c.b16 %v1483, %v1482
      %1500 = vmatprep.subr.bf16.mxu0 0
      %1501 = vmatpush1.bf16.msra.mxu0 %v1491
      %1502 = vmatprep.subr.bf16.mxu0 0
      %1503 = vmatpush1.bf16.msra.mxu0 %v1490
      %1504 = vmatprep.subr.bf16.mxu0 0
      %1505 = vmatpush1.bf16.msra.mxu0 %v1489
      %1506 = vmatprep.subr.bf16.mxu0 0
      %1507 = vmatpush1.bf16.msra.mxu0 %v1488
      %1508 = vmatprep.subr.bf16.mxu0 0
      %1509 = vmatpush1.bf16.msra.mxu0 %v1487
      %1510 = vmatprep.subr.bf16.mxu0 0
      %1511 = vmatpush1.bf16.msra.mxu0 %v1486
      %1512 = vmatprep.subr.bf16.mxu0 0
      %1513 = vmatpush1.bf16.msra.mxu0 %v1485
      %1514 = vmatprep.subr.bf16.mxu0 0
      %1515 = vmatpush1.bf16.msra.mxu0 %v1484
      %1516 = vmatprep.subr.bf16.mxu0 0
      %1517 = vmatpush2.bf16.msra.mxu0 0
      %1518 = vmatprep.subr.bf16.mxu0 0
      %1519 = vmatpush2.bf16.msra.mxu0 0
      %1520 = vmatprep.subr.bf16.mxu0 0
      %1521 = vmatpush2.bf16.msra.mxu0 0
      %1522 = vmatprep.subr.bf16.mxu0 0
      %1523 = vmatpush2.bf16.msra.mxu0 0
      %1524 = vmatprep.subr.bf16.mxu0 0
      %1525 = vmatpush2.bf16.msra.mxu0 0
      %1526 = vmatprep.subr.bf16.mxu0 0
      %1527 = vmatpush2.bf16.msra.mxu0 0
      %1528 = vmatprep.subr.bf16.mxu0 0
      %1529 = vmatpush2.bf16.msra.mxu0 0
      %1530 = vmatprep.subr.bf16.mxu0 0
      %1531 = vmatpush2.bf16.msra.mxu0 0
      %1532 = vmatprep.mubr.bf16.mxu0 0
      %1533 = vmatmul.mubr.bf16.gmra.mxu0 %v1451
      %v1534 = vpop.f32.mrf.mxu0
      %v1535 = vadd.f32 0.0, %v1534
      %v1536 = vpop.f32.mrf.mxu0
      %v1537 = vpop.f32.mrf.mxu0
      %v1538 = vpop.f32.mrf.mxu0
      %1539 = vdwg.mxu0
      %v1540 = vmax.f32 %v1535, 0.0
      %v1541 = vld [vmem:[%s7] sm:$0xf]
      %v1542 = vld [vmem:[%s7 + $0x4] sm:$0xf]
      %v1543 = vld [vmem:[%s7 + $0x8] sm:$0xf]
      %v1544 = vld [vmem:[%s7 + $0xc] sm:$0xf]
      %v1545 = vld [vmem:[%s7 + $0x10] sm:$0xf]
      %v1546 = vld [vmem:[%s7 + $0x14] sm:$0xf]
      %v1547 = vld [vmem:[%s7 + $0x18] sm:$0xf]
      %v1548 = vld [vmem:[%s7 + $0x1c] sm:$0xf]
      %v1549 = vld [vmem:[%s7 + $0x20] sm:$0xf]
      %v1550 = vld [vmem:[%s7 + $0x24] sm:$0xf]
      %v1551 = vld [vmem:[%s7 + $0x28] sm:$0xf]
      %v1552 = vld [vmem:[%s7 + $0x2c] sm:$0xf]
      %v1553 = vld [vmem:[%s7 + $0x30] sm:$0xf]
      %v1554 = vld [vmem:[%s7 + $0x34] sm:$0xf]
      %v1555 = vld [vmem:[%s7 + $0x38] sm:$0xf]
      %v1556 = vld [vmem:[%s7 + $0x3c] sm:$0xf]
      %v1557 = vpack.c.bf16 %v1540, %v1540
      %v1574 = vunpack.c.l.b16 %v1541
      %v1575 = vunpack.c.l.b16 %v1542
      %v1576 = vunpack.c.l.b16 %v1543
      %v1577 = vunpack.c.l.b16 %v1544
      %v1578 = vunpack.c.l.b16 %v1545
      %v1579 = vunpack.c.l.b16 %v1546
      %v1580 = vunpack.c.l.b16 %v1547
      %v1581 = vunpack.c.l.b16 %v1548
      %v1582 = vunpack.c.l.b16 %v1549
      %v1583 = vunpack.c.l.b16 %v1550
      %v1584 = vunpack.c.l.b16 %v1551
      %v1585 = vunpack.c.l.b16 %v1552
      %v1586 = vunpack.c.l.b16 %v1553
      %v1587 = vunpack.c.l.b16 %v1554
      %v1588 = vunpack.c.l.b16 %v1555
      %v1589 = vunpack.c.l.b16 %v1556
      %v1590 = vpack.c.b16 %v1575, %v1574
      %v1591 = vpack.c.b16 %v1577, %v1576
      %v1592 = vpack.c.b16 %v1579, %v1578
      %v1593 = vpack.c.b16 %v1581, %v1580
      %v1594 = vpack.c.b16 %v1583, %v1582
      %v1595 = vpack.c.b16 %v1585, %v1584
      %v1596 = vpack.c.b16 %v1587, %v1586
      %v1597 = vpack.c.b16 %v1589, %v1588
      %1606 = vmatprep.subr.bf16.mxu0 0
      %1607 = vmatpush1.bf16.msra.mxu0 %v1597
      %1608 = vmatprep.subr.bf16.mxu0 0
      %1609 = vmatpush1.bf16.msra.mxu0 %v1596
      %1610 = vmatprep.subr.bf16.mxu0 0
      %1611 = vmatpush1.bf16.msra.mxu0 %v1595
      %1612 = vmatprep.subr.bf16.mxu0 0
      %1613 = vmatpush1.bf16.msra.mxu0 %v1594
      %1614 = vmatprep.subr.bf16.mxu0 0
      %1615 = vmatpush1.bf16.msra.mxu0 %v1593
      %1616 = vmatprep.subr.bf16.mxu0 0
      %1617 = vmatpush1.bf16.msra.mxu0 %v1592
      %1618 = vmatprep.subr.bf16.mxu0 0
      %1619 = vmatpush1.bf16.msra.mxu0 %v1591
      %1620 = vmatprep.subr.bf16.mxu0 0
      %1621 = vmatpush1.bf16.msra.mxu0 %v1590
      %1622 = vmatprep.subr.bf16.mxu0 0
      %1623 = vmatpush2.bf16.msra.mxu0 0
      %1624 = vmatprep.subr.bf16.mxu0 0
      %1625 = vmatpush2.bf16.msra.mxu0 0
      %1626 = vmatprep.subr.bf16.mxu0 0
      %1627 = vmatpush2.bf16.msra.mxu0 0
      %1628 = vmatprep.subr.bf16.mxu0 0
      %1629 = vmatpush2.bf16.msra.mxu0 0
      %1630 = vmatprep.subr.bf16.mxu0 0
      %1631 = vmatpush2.bf16.msra.mxu0 0
      %1632 = vmatprep.subr.bf16.mxu0 0
      %1633 = vmatpush2.bf16.msra.mxu0 0
      %1634 = vmatprep.subr.bf16.mxu0 0
      %1635 = vmatpush2.bf16.msra.mxu0 0
      %1636 = vmatprep.subr.bf16.mxu0 0
      %1637 = vmatpush2.bf16.msra.mxu0 0
      %1638 = vmatprep.mubr.bf16.mxu0 0
      %1639 = vmatmul.mubr.bf16.gmra.mxu0 %v1557
      %v1640 = vpop.f32.mrf.mxu0
      %v1641 = vadd.f32 0.0, %v1640
      %v1642 = vpop.f32.mrf.mxu0
      %v1643 = vpop.f32.mrf.mxu0
      %v1644 = vpop.f32.mrf.mxu0
      %1645 = vdwg.mxu0
      %v1646 = vadd.f32 %v1641, %v1641
      %v1647 = vsub.f32 0.0, %v1646
      %v1648 = vmul.f32 %v1647, 1.442695
      %v1649 = vpow.pop %v1648
      %v1650 = vadd.f32 %v1649, 1.0
      %v1651 = vrcp.pop %v1650
      %v1652 = vmul.f32 %v1651, %v1434
      %1653 = vadd.xlane.f32.xlu0 %v1652
      %v1654 = vpop.xlane.xlu0 %1653
      %v1655 = vrcp.pop 128.0
      %v1656 = vmul.f32 %v1654, %v1655
      %1657 = vmax.xlane.f32.xlu0 %v1652
      %v1658 = vpop.xlane.xlu0 %1657
      %v1659 = vld [vmem:[%s9 + $0xe] sm:$0x1]
      %v1660 = vlaneseq
      %v1661 = vshrl.u32 %v1660, 7
      %v1662 = vsub.s32 0, %v1661
      %v1663 = vrot.slane %v1659, %v1662
      %v1664 = vmul.f32 %v1656, %v1663
      %v1665 = vmul.f32 %v1658, %v1663
      %1667 = vrot.lane.b32.xlu0 %v1665, 127
      %v1668 = vpop.permute.xlu0 %1667
      %v1670 = vadd.f32 %v1664, %v1668
      %v1671 = vsub.f32 0.0, %v1670
      %v1672 = vmul.f32 %v1671, 1.442695
      %v1673 = vpow.pop %v1672
      %v1674 = vadd.f32 %v1673, 1.0
      %v1675 = vrcp.pop %v1674
      %1677 = vset.pattern.permute.xlu0 0
      %1678 = vperm.xlu0 %1677, %v1675
      %v1679 = vpop.permute.xlu0 %1678
      %v1681 = vmul.f32 %v1679, %v1652
      %s1682 = scalar_lea.vmem %s10, 16
      %v1683 = vld [vmem:[%s1682] sm:$0xff]
      %s1684 = scalar_lea.vmem %s5, 64
      %v1685 = vld [vmem:[%s1684] sm:$0xf]
      %v1686 = vld [vmem:[%s1684 + $0x4] sm:$0xf]
      %v1687 = vld [vmem:[%s1684 + $0x8] sm:$0xf]
      %v1688 = vld [vmem:[%s1684 + $0xc] sm:$0xf]
      %v1689 = vld [vmem:[%s1684 + $0x10] sm:$0xf]
      %v1690 = vld [vmem:[%s1684 + $0x14] sm:$0xf]
      %v1691 = vld [vmem:[%s1684 + $0x18] sm:$0xf]
      %v1692 = vld [vmem:[%s1684 + $0x1c] sm:$0xf]
      %v1693 = vld [vmem:[%s1684 + $0x20] sm:$0xf]
      %v1694 = vld [vmem:[%s1684 + $0x24] sm:$0xf]
      %v1695 = vld [vmem:[%s1684 + $0x28] sm:$0xf]
      %v1696 = vld [vmem:[%s1684 + $0x2c] sm:$0xf]
      %v1697 = vld [vmem:[%s1684 + $0x30] sm:$0xf]
      %v1698 = vld [vmem:[%s1684 + $0x34] sm:$0xf]
      %v1699 = vld [vmem:[%s1684 + $0x38] sm:$0xf]
      %v1700 = vld [vmem:[%s1684 + $0x3c] sm:$0xf]
      %v1701 = vpack.c.bf16 %v1681, %v1681
      %v1702 = vld [vmem:[%s9 + $0x9] sm:$0x1]
      %v1703 = vlaneseq
      %v1704 = vshrl.u32 %v1703, 7
      %v1705 = vsub.s32 0, %v1704
      %v1706 = vrot.slane %v1702, %v1705
      %v1723 = vunpack.c.l.b16 %v1685
      %v1724 = vunpack.c.l.b16 %v1686
      %v1725 = vunpack.c.l.b16 %v1687
      %v1726 = vunpack.c.l.b16 %v1688
      %v1727 = vunpack.c.l.b16 %v1689
      %v1728 = vunpack.c.l.b16 %v1690
      %v1729 = vunpack.c.l.b16 %v1691
      %v1730 = vunpack.c.l.b16 %v1692
      %v1731 = vunpack.c.l.b16 %v1693
      %v1732 = vunpack.c.l.b16 %v1694
      %v1733 = vunpack.c.l.b16 %v1695
      %v1734 = vunpack.c.l.b16 %v1696
      %v1735 = vunpack.c.l.b16 %v1697
      %v1736 = vunpack.c.l.b16 %v1698
      %v1737 = vunpack.c.l.b16 %v1699
      %v1738 = vunpack.c.l.b16 %v1700
      %v1739 = vpack.c.b16 %v1724, %v1723
      %v1740 = vpack.c.b16 %v1726, %v1725
      %v1741 = vpack.c.b16 %v1728, %v1727
      %v1742 = vpack.c.b16 %v1730, %v1729
      %v1743 = vpack.c.b16 %v1732, %v1731
      %v1744 = vpack.c.b16 %v1734, %v1733
      %v1745 = vpack.c.b16 %v1736, %v1735
      %v1746 = vpack.c.b16 %v1738, %v1737
      %1755 = vmatprep.subr.bf16.mxu0 0
      %1756 = vmatpush1.bf16.msra.mxu0 %v1746
      %1757 = vmatprep.subr.bf16.mxu0 0
      %1758 = vmatpush1.bf16.msra.mxu0 %v1745
      %1759 = vmatprep.subr.bf16.mxu0 0
      %1760 = vmatpush1.bf16.msra.mxu0 %v1744
      %1761 = vmatprep.subr.bf16.mxu0 0
      %1762 = vmatpush1.bf16.msra.mxu0 %v1743
      %1763 = vmatprep.subr.bf16.mxu0 0
      %1764 = vmatpush1.bf16.msra.mxu0 %v1742
      %1765 = vmatprep.subr.bf16.mxu0 0
      %1766 = vmatpush1.bf16.msra.mxu0 %v1741
      %1767 = vmatprep.subr.bf16.mxu0 0
      %1768 = vmatpush1.bf16.msra.mxu0 %v1740
      %1769 = vmatprep.subr.bf16.mxu0 0
      %1770 = vmatpush1.bf16.msra.mxu0 %v1739
      %1771 = vmatprep.subr.bf16.mxu0 0
      %1772 = vmatpush2.bf16.msra.mxu0 0
      %1773 = vmatprep.subr.bf16.mxu0 0
      %1774 = vmatpush2.bf16.msra.mxu0 0
      %1775 = vmatprep.subr.bf16.mxu0 0
      %1776 = vmatpush2.bf16.msra.mxu0 0
      %1777 = vmatprep.subr.bf16.mxu0 0
      %1778 = vmatpush2.bf16.msra.mxu0 0
      %1779 = vmatprep.subr.bf16.mxu0 0
      %1780 = vmatpush2.bf16.msra.mxu0 0
      %1781 = vmatprep.subr.bf16.mxu0 0
      %1782 = vmatpush2.bf16.msra.mxu0 0
      %1783 = vmatprep.subr.bf16.mxu0 0
      %1784 = vmatpush2.bf16.msra.mxu0 0
      %1785 = vmatprep.subr.bf16.mxu0 0
      %1786 = vmatpush2.bf16.msra.mxu0 0
      %1787 = vmatprep.mubr.bf16.mxu0 0
      %1788 = vmatmul.mubr.bf16.gmra.mxu0 %v1701
      %v1789 = vpop.f32.mrf.mxu0
      %v1790 = vadd.f32 %v1706, %v1789
      %v1791 = vpop.f32.mrf.mxu0
      %v1792 = vpop.f32.mrf.mxu0
      %v1793 = vpop.f32.mrf.mxu0
      %1794 = vdwg.mxu0
      %v1795 = vmul.f32 %v1683, %v1790
      %v1796 = vmax.f32 %v1795, 0.0
      %v1797 = vand.u32 2147483647, %v1795
      %v1798 = vsub.f32 0.0, %v1797
      %v1799 = vmul.f32 %v1798, 1.442695
      %v1800 = vpow.pop %v1799
      %v1801 = vadd.f32 %v1800, 1.0
      %v1802 = vlog2.pop %v1801
      %v1803 = vmul.f32 %v1802, 0.6931472
      %v1804 = vmul.f32 -0.5, %v1800
      %v1805 = vadd.f32 %v1804, 1.0
      %v1806 = vmul.f32 %v1805, %v1800
      %v1807 = vand.u32 2147483647, %v1800
      %vm1808 = vcmp.lt.f32.partialorder %v1807, 0.0004427343
      %v1809 = vsel %vm1808, %v1806, %v1803
      %v1810 = vadd.f32 %v1796, %v1809
      %s1811 = scalar_lea.vmem %s10, 24
      %v1812 = vld [vmem:[%s1811] sm:$0xff]
      %s1813 = scalar_lea.vmem %s5, 128
      %v1814 = vld [vmem:[%s1813] sm:$0xf]
      %v1815 = vld [vmem:[%s1813 + $0x4] sm:$0xf]
      %v1816 = vld [vmem:[%s1813 + $0x8] sm:$0xf]
      %v1817 = vld [vmem:[%s1813 + $0xc] sm:$0xf]
      %v1818 = vld [vmem:[%s1813 + $0x10] sm:$0xf]
      %v1819 = vld [vmem:[%s1813 + $0x14] sm:$0xf]
      %v1820 = vld [vmem:[%s1813 + $0x18] sm:$0xf]
      %v1821 = vld [vmem:[%s1813 + $0x1c] sm:$0xf]
      %v1822 = vld [vmem:[%s1813 + $0x20] sm:$0xf]
      %v1823 = vld [vmem:[%s1813 + $0x24] sm:$0xf]
      %v1824 = vld [vmem:[%s1813 + $0x28] sm:$0xf]
      %v1825 = vld [vmem:[%s1813 + $0x2c] sm:$0xf]
      %v1826 = vld [vmem:[%s1813 + $0x30] sm:$0xf]
      %v1827 = vld [vmem:[%s1813 + $0x34] sm:$0xf]
      %v1828 = vld [vmem:[%s1813 + $0x38] sm:$0xf]
      %v1829 = vld [vmem:[%s1813 + $0x3c] sm:$0xf]
      %v1830 = vpack.c.bf16 %v1810, %v1810
      %v1831 = vld [vmem:[%s9 + $0xa] sm:$0x1]
      %v1832 = vlaneseq
      %v1833 = vshrl.u32 %v1832, 7
      %v1834 = vsub.s32 0, %v1833
      %v1835 = vrot.slane %v1831, %v1834
      %v1852 = vunpack.c.l.b16 %v1814
      %v1853 = vunpack.c.l.b16 %v1815
      %v1854 = vunpack.c.l.b16 %v1816
      %v1855 = vunpack.c.l.b16 %v1817
      %v1856 = vunpack.c.l.b16 %v1818
      %v1857 = vunpack.c.l.b16 %v1819
      %v1858 = vunpack.c.l.b16 %v1820
      %v1859 = vunpack.c.l.b16 %v1821
      %v1860 = vunpack.c.l.b16 %v1822
      %v1861 = vunpack.c.l.b16 %v1823
      %v1862 = vunpack.c.l.b16 %v1824
      %v1863 = vunpack.c.l.b16 %v1825
      %v1864 = vunpack.c.l.b16 %v1826
      %v1865 = vunpack.c.l.b16 %v1827
      %v1866 = vunpack.c.l.b16 %v1828
      %v1867 = vunpack.c.l.b16 %v1829
      %v1868 = vpack.c.b16 %v1853, %v1852
      %v1869 = vpack.c.b16 %v1855, %v1854
      %v1870 = vpack.c.b16 %v1857, %v1856
      %v1871 = vpack.c.b16 %v1859, %v1858
      %v1872 = vpack.c.b16 %v1861, %v1860
      %v1873 = vpack.c.b16 %v1863, %v1862
      %v1874 = vpack.c.b16 %v1865, %v1864
      %v1875 = vpack.c.b16 %v1867, %v1866
      %1884 = vmatprep.subr.bf16.mxu0 0
      %1885 = vmatpush1.bf16.msra.mxu0 %v1875
      %1886 = vmatprep.subr.bf16.mxu0 0
      %1887 = vmatpush1.bf16.msra.mxu0 %v1874
      %1888 = vmatprep.subr.bf16.mxu0 0
      %1889 = vmatpush1.bf16.msra.mxu0 %v1873
      %1890 = vmatprep.subr.bf16.mxu0 0
      %1891 = vmatpush1.bf16.msra.mxu0 %v1872
      %1892 = vmatprep.subr.bf16.mxu0 0
      %1893 = vmatpush1.bf16.msra.mxu0 %v1871
      %1894 = vmatprep.subr.bf16.mxu0 0
      %1895 = vmatpush1.bf16.msra.mxu0 %v1870
      %1896 = vmatprep.subr.bf16.mxu0 0
      %1897 = vmatpush1.bf16.msra.mxu0 %v1869
      %1898 = vmatprep.subr.bf16.mxu0 0
      %1899 = vmatpush1.bf16.msra.mxu0 %v1868
      %1900 = vmatprep.subr.bf16.mxu0 0
      %1901 = vmatpush2.bf16.msra.mxu0 0
      %1902 = vmatprep.subr.bf16.mxu0 0
      %1903 = vmatpush2.bf16.msra.mxu0 0
      %1904 = vmatprep.subr.bf16.mxu0 0
      %1905 = vmatpush2.bf16.msra.mxu0 0
      %1906 = vmatprep.subr.bf16.mxu0 0
      %1907 = vmatpush2.bf16.msra.mxu0 0
      %1908 = vmatprep.subr.bf16.mxu0 0
      %1909 = vmatpush2.bf16.msra.mxu0 0
      %1910 = vmatprep.subr.bf16.mxu0 0
      %1911 = vmatpush2.bf16.msra.mxu0 0
      %1912 = vmatprep.subr.bf16.mxu0 0
      %1913 = vmatpush2.bf16.msra.mxu0 0
      %1914 = vmatprep.subr.bf16.mxu0 0
      %1915 = vmatpush2.bf16.msra.mxu0 0
      %1916 = vmatprep.mubr.bf16.mxu0 0
      %1917 = vmatmul.mubr.bf16.gmra.mxu0 %v1830
      %v1918 = vpop.f32.mrf.mxu0
      %v1919 = vadd.f32 %v1835, %v1918
      %v1920 = vpop.f32.mrf.mxu0
      %v1921 = vpop.f32.mrf.mxu0
      %v1922 = vpop.f32.mrf.mxu0
      %1923 = vdwg.mxu0
      %v1924 = vmul.f32 %v1812, %v1919
      %v1925 = vld [vmem:[%s9 + $0xb] sm:$0x1]
      %v1926 = vld [vmem:[%s9 + $0xc] sm:$0x1]
      %v1927 = vrot.slane %v1924, 4
      %v1928 = vadd.f32 %v1924, %v1927
      %v1929 = vrot.slane %v1928, 2
      %v1930 = vadd.f32 %v1928, %v1929
      %v1931 = vrot.slane %v1930, 1
      %v1932 = vadd.f32 %v1930, %v1931
      %v1933 = vmul.f32 %v1932, %v1159
      %v1934 = vsub.f32 %v1924, %v1933
      %v1935 = vmul.f32 %v1934, %v1934
      %v1936 = vrot.slane %v1935, 4
      %v1937 = vadd.f32 %v1935, %v1936
      %v1938 = vrot.slane %v1937, 2
      %v1939 = vadd.f32 %v1937, %v1938
      %v1940 = vrot.slane %v1939, 1
      %v1941 = vadd.f32 %v1939, %v1940
      %v1942 = vmul.f32 %v1941, %v1159
      %v1943 = vadd.f32 %v1942, 1e-05
      %v1944 = vrsqrt.pop %v1943
      %v1945 = vmul.f32 %v1934, %v1944
      %v1946 = vlaneseq
      %v1947 = vshrl.u32 %v1946, 7
      %v1948 = vsub.s32 0, %v1947
      %v1949 = vrot.slane %v1925, %v1948
      %v1950 = vmul.f32 %v1945, %v1949
      %v1951 = vlaneseq
      %v1952 = vshrl.u32 %v1951, 7
      %v1953 = vsub.s32 0, %v1952
      %v1954 = vrot.slane %v1926, %v1953
      %v1955 = vadd.f32 %v1950, %v1954
      %v1956 = vmax.f32 %v1955, 0.0
      %v1957 = vand.u32 2147483647, %v1955
      %v1958 = vsub.f32 0.0, %v1957
      %v1959 = vmul.f32 %v1958, 1.442695
      %v1960 = vpow.pop %v1959
      %v1961 = vadd.f32 %v1960, 1.0
      %v1962 = vlog2.pop %v1961
      %v1963 = vmul.f32 %v1962, 0.6931472
      %v1964 = vmul.f32 -0.5, %v1960
      %v1965 = vadd.f32 %v1964, 1.0
      %v1966 = vmul.f32 %v1965, %v1960
      %v1967 = vand.u32 2147483647, %v1960
      %vm1968 = vcmp.lt.f32.partialorder %v1967, 0.0004427343
      %v1969 = vsel %vm1968, %v1966, %v1963
      %v1970 = vadd.f32 %v1956, %v1969
      %v1971 = vld [vmem:[%s8] sm:$0xf]
      %v1972 = vld [vmem:[%s8 + $0x4] sm:$0xf]
      %v1973 = vld [vmem:[%s8 + $0x8] sm:$0xf]
      %v1974 = vld [vmem:[%s8 + $0xc] sm:$0xf]
      %v1975 = vld [vmem:[%s8 + $0x10] sm:$0xf]
      %v1976 = vld [vmem:[%s8 + $0x14] sm:$0xf]
      %v1977 = vld [vmem:[%s8 + $0x18] sm:$0xf]
      %v1978 = vld [vmem:[%s8 + $0x1c] sm:$0xf]
      %v1979 = vld [vmem:[%s8 + $0x20] sm:$0xf]
      %v1980 = vld [vmem:[%s8 + $0x24] sm:$0xf]
      %v1981 = vld [vmem:[%s8 + $0x28] sm:$0xf]
      %v1982 = vld [vmem:[%s8 + $0x2c] sm:$0xf]
      %v1983 = vld [vmem:[%s8 + $0x30] sm:$0xf]
      %v1984 = vld [vmem:[%s8 + $0x34] sm:$0xf]
      %v1985 = vld [vmem:[%s8 + $0x38] sm:$0xf]
      %v1986 = vld [vmem:[%s8 + $0x3c] sm:$0xf]
      %v1987 = vpack.c.bf16 %v1970, %v1970
      %v1988 = vld [vmem:[%s9 + $0xd] sm:$0x1]
      %v1989 = vlaneseq
      %v1990 = vshrl.u32 %v1989, 7
      %v1991 = vsub.s32 0, %v1990
      %v1992 = vrot.slane %v1988, %v1991
      %v2009 = vunpack.c.l.b16 %v1971
      %v2010 = vunpack.c.l.b16 %v1972
      %v2011 = vunpack.c.l.b16 %v1973
      %v2012 = vunpack.c.l.b16 %v1974
      %v2013 = vunpack.c.l.b16 %v1975
      %v2014 = vunpack.c.l.b16 %v1976
      %v2015 = vunpack.c.l.b16 %v1977
      %v2016 = vunpack.c.l.b16 %v1978
      %v2017 = vunpack.c.l.b16 %v1979
      %v2018 = vunpack.c.l.b16 %v1980
      %v2019 = vunpack.c.l.b16 %v1981
      %v2020 = vunpack.c.l.b16 %v1982
      %v2021 = vunpack.c.l.b16 %v1983
      %v2022 = vunpack.c.l.b16 %v1984
      %v2023 = vunpack.c.l.b16 %v1985
      %v2024 = vunpack.c.l.b16 %v1986
      %v2025 = vpack.c.b16 %v2010, %v2009
      %v2026 = vpack.c.b16 %v2012, %v2011
      %v2027 = vpack.c.b16 %v2014, %v2013
      %v2028 = vpack.c.b16 %v2016, %v2015
      %v2029 = vpack.c.b16 %v2018, %v2017
      %v2030 = vpack.c.b16 %v2020, %v2019
      %v2031 = vpack.c.b16 %v2022, %v2021
      %v2032 = vpack.c.b16 %v2024, %v2023
      %2041 = vmatprep.subr.bf16.mxu0 0
      %2042 = vmatpush1.bf16.msra.mxu0 %v2032
      %2043 = vmatprep.subr.bf16.mxu0 0
      %2044 = vmatpush1.bf16.msra.mxu0 %v2031
      %2045 = vmatprep.subr.bf16.mxu0 0
      %2046 = vmatpush1.bf16.msra.mxu0 %v2030
      %2047 = vmatprep.subr.bf16.mxu0 0
      %2048 = vmatpush1.bf16.msra.mxu0 %v2029
      %2049 = vmatprep.subr.bf16.mxu0 0
      %2050 = vmatpush1.bf16.msra.mxu0 %v2028
      %2051 = vmatprep.subr.bf16.mxu0 0
      %2052 = vmatpush1.bf16.msra.mxu0 %v2027
      %2053 = vmatprep.subr.bf16.mxu0 0
      %2054 = vmatpush1.bf16.msra.mxu0 %v2026
      %2055 = vmatprep.subr.bf16.mxu0 0
      %2056 = vmatpush1.bf16.msra.mxu0 %v2025
      %2057 = vmatprep.subr.bf16.mxu0 0
      %2058 = vmatpush2.bf16.msra.mxu0 0
      %2059 = vmatprep.subr.bf16.mxu0 0
      %2060 = vmatpush2.bf16.msra.mxu0 0
      %2061 = vmatprep.subr.bf16.mxu0 0
      %2062 = vmatpush2.bf16.msra.mxu0 0
      %2063 = vmatprep.subr.bf16.mxu0 0
      %2064 = vmatpush2.bf16.msra.mxu0 0
      %2065 = vmatprep.subr.bf16.mxu0 0
      %2066 = vmatpush2.bf16.msra.mxu0 0
      %2067 = vmatprep.subr.bf16.mxu0 0
      %2068 = vmatpush2.bf16.msra.mxu0 0
      %2069 = vmatprep.subr.bf16.mxu0 0
      %2070 = vmatpush2.bf16.msra.mxu0 0
      %2071 = vmatprep.subr.bf16.mxu0 0
      %2072 = vmatpush2.bf16.msra.mxu0 0
      %2073 = vmatprep.mubr.bf16.mxu0 0
      %2074 = vmatmul.mubr.bf16.gmra.mxu0 %v1987
      %v2075 = vpop.f32.mrf.mxu0
      %v2076 = vadd.f32 %v1992, %v2075
      %v2077 = vpop.f32.mrf.mxu0
      %v2078 = vpop.f32.mrf.mxu0
      %v2079 = vpop.f32.mrf.mxu0
      %2080 = vdwg.mxu0
      %2081 = vst [vmem:[#allocation3] sm:$0xff] %v2076
    $region49: #{_lambda_.1} parent=1 // pred_fallthru
      _
    // Predicated region
    $region50: #{_lambda_.1} parent=1 // pred_check
      _
    $region51: #{_lambda_.1} parent=1 // pred_check_branch
      %2083 = sbr.rel (0) target = $region53
    $region52: #{_lambda_.1} parent=1 // pred_region
      %s2085 = ssub.s32 128, 128
      %2086 = vsyncadd [#allocation4], %s2085
      %s2088 = sshll.u32 [#allocation3], 4
      %s2089 = int_to_ptr.vmem [resolvable:$true] %s2088
      %2091 = dma.vmem_to_hbm [thread:$0]  %s2089, 128, %s11, [#allocation4]
    $region53: #{_lambda_.1} parent=1 // pred_fallthru
      _
    // Predicated region
    $region54: #{_lambda_.1} parent=1 // pred_check
      _
    $region55: #{_lambda_.1} parent=1 // pred_check_branch
      %2093 = sbr.rel (0) target = $region57
    $region56: #{_lambda_.1} parent=1 // pred_region
      %2094 = dma.done [#allocation4], 128
    $region57: #{_lambda_.1} parent=1 // pred_fallthru
      _
    %2095 = vsyncpa [#allocation4], 1

</llo_original>
